<compile_context>
chip_gen: v7x
topology: tpu7x:2x2x1
jax: 0.10.0
libtpu: 0.0.40
codegen_flags: <defaults>
</compile_context>

<pallas_src>
import jax
import jax.numpy as jnp
from jax import lax
from jax.experimental import pallas as pl
from jax.experimental.pallas import tpu as pltpu


def _newton_recip(x):
    """EUP approximate reciprocal + one Newton step (exact to ~f32)."""
    r = pl.reciprocal(x, approx=True)
    return r * (2.0 - x * r)


def _make_attention_kernel(ti, c, c4, use_bf16):
    """Builds the kernel for tile size `ti` along the contraction axis."""
    cdt = jnp.bfloat16 if use_bf16 else jnp.float32

    def kernel(x_ref, wqv_ref, bv_ref, wt_ref, bt_ref, o_ref,
               q_scr, v_scr, xr_acc, cs_acc):
        i = pl.program_id(1)

        # --- once per batch element: fused q/v projection + accumulator init
        @pl.when(i == 0)
        def _():
            x = x_ref[...].astype(jnp.float32)                         # (N, C)
            qv = jnp.dot(x, wqv_ref[...],
                         preferred_element_type=jnp.float32)           # (N, C+C4)
            v_scr[...] = (qv[:, :c] + bv_ref[...]).astype(cdt)         # (N, C)
            q_scr[...] = qv[:, c:].astype(cdt)                         # (N, C4)
            xr_acc[...] = jnp.zeros_like(xr_acc)
            cs_acc[...] = jnp.zeros_like(cs_acc)

        # --- one tile of the contraction ("key"/query-row) axis -------------
        off = pl.multiple_of(i * ti, ti)
        q_tile = q_scr[pl.ds(off, ti), :]                              # (TI, C4)
        v_tile = v_scr[pl.ds(off, ti), :]                              # (TI, C)

        # e[n, t] = q[n] . q[off + t] == energy[off + t, n]  (symmetric form),
        # i.e. a transposed energy slice -- no N x N transpose is ever needed.
        e = lax.dot_general(q_scr[...], q_tile, (((1,), (1,)), ((), ())),
                            preferred_element_type=jnp.float32)        # (N, TI)

        # Row-softmax of the original attention == per-lane (axis 0) softmax
        # of the transposed slice.  No divides on the N^2-sized data.
        mx = jnp.max(e, axis=0, keepdims=True)                         # (1, TI)
        p = jnp.exp(e - mx)                                            # (N, TI)
        rs = jnp.sum(p, axis=0, keepdims=True)                         # (1, TI)
        attn_t = p * _newton_recip(rs)                                 # attn^T slice

        # Accumulate the PCT dim=1 column sums and attention^T @ v.
        cs_acc[...] += jnp.sum(attn_t, axis=1, keepdims=True)          # (N, 1)
        xr_acc[...] += jnp.dot(attn_t.astype(cdt), v_tile,
                               preferred_element_type=jnp.float32)     # (N, C)

        # --- finalize on the last tile --------------------------------------
        @pl.when(i == pl.num_programs(1) - 1)
        def _():
            x = x_ref[...].astype(jnp.float32)
            x_r = xr_acc[...] * _newton_recip(1e-9 + cs_acc[...])      # (N, C)
            # trans_conv with BatchNorm folded into wt/bt, then ReLU.
            t = jnp.dot(x - x_r, wt_ref[...],
                        preferred_element_type=jnp.float32) + bt_ref[...]
            o_ref[...] = (x + jnp.maximum(t, 0.0)).astype(o_ref.dtype)

    return kernel


def attention_forward(x_ncw, wq, wv, bv, wt, bt, bn_gamma, bn_beta,
                      bn_mean, bn_var, bn_eps=1e-5, *, block_i=None,
                      use_bf16=True, vmem_limit_bytes=None):
    """x_ncw: (B, C, N) like PyTorch Conv1d input. Returns (B, C, N)."""
    B, C, N = x_ncw.shape
    C4 = wq.shape[1]

    # Fold inference BatchNorm into trans_conv weight/bias.
    scale = bn_gamma / jnp.sqrt(bn_var + bn_eps)                       # (C,)
    wt_f = wt * scale[None, :]                                         # (C, C)
    bt_f = (bt * scale + bn_beta - bn_mean * scale).reshape(1, C)      # (1, C)

    # Fuse the v and q projections into one lane-dense weight [wv | wq].
    w_qv = jnp.concatenate([wv, wq], axis=1)                           # (C, C+C4)
    bv2 = bv.reshape(1, C)

    x_nlc = jnp.transpose(x_ncw, (0, 2, 1))                            # (B, N, C)

    if block_i is None:
        block_i = N if N <= 512 else 512
    assert N % block_i == 0, "block_i must divide N"
    assert block_i == N or block_i % 8 == 0, "block_i must be a multiple of 8"
    num_i = N // block_i

    cp_kwargs = dict(dimension_semantics=("parallel", "arbitrary"))
    if vmem_limit_bytes is not None:
        cp_kwargs["vmem_limit_bytes"] = vmem_limit_bytes

    comp_dtype = jnp.bfloat16 if use_bf16 else jnp.float32

    out = pl.pallas_call(
        _make_attention_kernel(block_i, C, C4, use_bf16),
        out_shape=jax.ShapeDtypeStruct((B, N, C), x_nlc.dtype),
        grid_spec=pltpu.PrefetchScalarGridSpec(
            num_scalar_prefetch=0,
            grid=(B, num_i),
            in_specs=[
                pl.BlockSpec((None, N, C), lambda b, i: (b, 0, 0)),    # x (resident)
                pl.BlockSpec((C, C + C4), lambda b, i: (0, 0)),        # [wv | wq]
                pl.BlockSpec((1, C), lambda b, i: (0, 0)),             # bv
                pl.BlockSpec((C, C), lambda b, i: (0, 0)),             # wt (BN folded)
                pl.BlockSpec((1, C), lambda b, i: (0, 0)),             # bt (BN folded)
            ],
            out_specs=pl.BlockSpec((None, N, C), lambda b, i: (b, 0, 0)),
            scratch_shapes=[
                pltpu.VMEM((N, C4), comp_dtype),     # cached q projection
                pltpu.VMEM((N, C), comp_dtype),      # cached v projection
                pltpu.VMEM((N, C), jnp.float32),     # x_r accumulator
                pltpu.VMEM((N, 1), jnp.float32),     # column-sum accumulator
            ],
        ),
        compiler_params=pltpu.CompilerParams(**cp_kwargs),
    )(x_nlc, w_qv, bv2, wt_f, bt_f)

    return jnp.transpose(out, (0, 2, 1))                               # (B, C, N)


def _reference_forward(x_ncw, wq, wv, bv, wt, bt, g, b_, m, v_, eps=1e-5):
    """Pure-JAX reference mirroring the PyTorch forward (inference BN)."""
    x = jnp.transpose(x_ncw, (0, 2, 1)).astype(jnp.float32)            # (B, N, C)
    q = x @ wq                                                         # (B, N, C4)
    energy = jnp.einsum('bnd,bmd->bnm', q, q)
    attn = jax.nn.softmax(energy, axis=-1)
    attn = attn / (1e-9 + jnp.sum(attn, axis=1, keepdims=True))
    v = x @ wv + bv
    x_r = jnp.einsum('bmn,bmc->bnc', attn, v)
    t = (x - x_r) @ wt + bt
    scale = g / jnp.sqrt(v_ + eps)
    shift = b_ - m * scale
    y = jnp.maximum(t * scale + shift, 0.0)
    out = x + y
    return jnp.transpose(out, (0, 2, 1))


if __name__ == "__main__":
    # Full-precision f32 matmuls for the reference and the f32 kernel path.
    jax.config.update("jax_default_matmul_precision", "highest")

    B, C, N = 2, 16, 32
    C4 = C // 4

    key = jax.random.PRNGKey(0)
    ks = jax.random.split(key, 10)

    # Conv1d kernel_size=1 weights stored pre-transposed as (C_in, C_out).
    wq = 0.1 * jax.random.normal(ks[0], (C, C4), jnp.float32)   # q_conv == k_conv
    wv = 0.1 * jax.random.normal(ks[1], (C, C), jnp.float32)
    bv = 0.1 * jax.random.normal(ks[2], (C,), jnp.float32)
    wt = 0.1 * jax.random.normal(ks[3], (C, C), jnp.float32)
    bt = 0.1 * jax.random.normal(ks[4], (C,), jnp.float32)
    bn_gamma = 1.0 + 0.1 * jax.random.normal(ks[5], (C,), jnp.float32)
    bn_beta = 0.1 * jax.random.normal(ks[6], (C,), jnp.float32)
    bn_mean = 0.1 * jax.random.normal(ks[7], (C,), jnp.float32)
    bn_var = jnp.abs(1.0 + 0.1 * jax.random.normal(ks[8], (C,), jnp.float32))

    x = jax.random.normal(ks[9], (B, C, N), jnp.float32)        # PyTorch NCW layout

    ref = _reference_forward(x, wq, wv, bv, wt, bt,
                             bn_gamma, bn_beta, bn_mean, bn_var)

    # f32 MXU path (block_i=16 so the tiled accumulation is exercised).
    out_f32 = attention_forward(x, wq, wv, bv, wt, bt,
                                bn_gamma, bn_beta, bn_mean, bn_var,
                                block_i=16, use_bf16=False)
    out_f32 = jax.block_until_ready(out_f32)
    assert out_f32.shape == (B, C, N)
    assert jnp.allclose(out_f32, ref, atol=1e-3, rtol=1e-3), "f32 path mismatch"

    # bf16-fed MXU path (f32 accumulation) -- relaxed tolerance.
    out_bf16 = attention_forward(x, wq, wv, bv, wt, bt,
                                 bn_gamma, bn_beta, bn_mean, bn_var,
                                 block_i=16, use_bf16=True)
    out_bf16 = jax.block_until_ready(out_bf16)
    assert out_bf16.shape == (B, C, N)
    assert jnp.allclose(out_bf16, ref, atol=5e-2, rtol=5e-2), "bf16 path mismatch"

    print("KERNEL_OK")
</pallas_src>

<mosaic_0001>
module attributes {stable_mosaic.version = 11 : i64} {
  func.func @kernel(%arg0: i32, %arg1: i32, %arg2: memref<1x32x16xf32, #tpu.memory_space<vmem>>, %arg3: memref<16x20xf32, #tpu.memory_space<vmem>>, %arg4: memref<1x16xf32, #tpu.memory_space<vmem>>, %arg5: memref<16x16xf32, #tpu.memory_space<vmem>>, %arg6: memref<1x16xf32, #tpu.memory_space<vmem>>, %arg7: memref<1x32x16xf32, #tpu.memory_space<vmem>>, %arg8: memref<32x4xf32, #tpu.memory_space<vmem>>, %arg9: memref<32x16xf32, #tpu.memory_space<vmem>>, %arg10: memref<32x16xf32, #tpu.memory_space<vmem>>, %arg11: memref<32x1xf32, #tpu.memory_space<vmem>>) attributes {dimension_semantics = [#tpu.dimension_semantics<parallel>, #tpu.dimension_semantics<arbitrary>], iteration_bounds = array<i64: 2, 2>, scalar_prefetch = 0 : i64, scratch_operands = 4 : i64, tpu.core_type = #tpu.core_type<tc>, window_params = [{transform_indices = @transform_0, window_bounds = array<i64: 1, 32, 16>}, {pipeline_mode = #tpu.pipeline_mode<synchronous>, transform_indices = @transform_1, window_bounds = array<i64: 16, 20>}, {pipeline_mode = #tpu.pipeline_mode<synchronous>, transform_indices = @transform_2, window_bounds = array<i64: 1, 16>}, {pipeline_mode = #tpu.pipeline_mode<synchronous>, transform_indices = @transform_3, window_bounds = array<i64: 16, 16>}, {pipeline_mode = #tpu.pipeline_mode<synchronous>, transform_indices = @transform_4, window_bounds = array<i64: 1, 16>}, {transform_indices = @transform_5, window_bounds = array<i64: 1, 32, 16>}]} {
    %c0_i32 = arith.constant 0 : i32
    %0 = arith.cmpi eq, %arg1, %c0_i32 : i32
    %1 = arith.extui %0 : i1 to i32
    %c0_i32_0 = arith.constant 0 : i32
    %2 = arith.cmpi ne, %1, %c0_i32_0 : i32
    scf.if %2 {
      %c0_18 = arith.constant 0 : index
      %c0_19 = arith.constant 0 : index
      %c0_20 = arith.constant 0 : index
      %37 = vector.load %arg2[%c0_18, %c0_19, %c0_20] : memref<1x32x16xf32, #tpu.memory_space<vmem>>, vector<1x32x16xf32>
      %38 = vector.shape_cast %37 : vector<1x32x16xf32> to vector<32x16xf32>
      %c0_21 = arith.constant 0 : index
      %c0_22 = arith.constant 0 : index
      %39 = vector.load %arg3[%c0_21, %c0_22] : memref<16x20xf32, #tpu.memory_space<vmem>>, vector<16x20xf32>
      %cst_23 = arith.constant dense<0.000000e+00> : vector<32x20xf32>
      %40 = tpu.matmul %38, %39, %cst_23 {dimension_numbers = #tpu.dot_dimension_numbers<[1], [0], [0], [1], [0, 0, 1, 1], [], []>, precision = #tpu.contract_precision<fp32>} : vector<32x16xf32>, vector<16x20xf32>, vector<32x20xf32> -> vector<32x20xf32>
      %41 = vector.extract_strided_slice %40 {offsets = [0, 0], sizes = [32, 16], strides = [1, 1]} : vector<32x20xf32> to vector<32x16xf32>
      %c0_24 = arith.constant 0 : index
      %c0_25 = arith.constant 0 : index
      %42 = vector.load %arg4[%c0_24, %c0_25] : memref<1x16xf32, #tpu.memory_space<vmem>>, vector<1x16xf32>
      %43 = vector.broadcast %42 : vector<1x16xf32> to vector<32x16xf32>
      %44 = arith.addf %41, %43 : vector<32x16xf32>
      %c0_26 = arith.constant 0 : index
      %c0_27 = arith.constant 0 : index
      %45 = vector.load %arg9[%c0_26, %c0_27] : memref<32x16xf32, #tpu.memory_space<vmem>>, vector<32x16xf32>
      tpu.vector_store %arg9[%c0_26, %c0_27], %44 {strides = array<i32>} : memref<32x16xf32, #tpu.memory_space<vmem>>, vector<32x16xf32>,
      %46 = vector.extract_strided_slice %40 {offsets = [0, 16], sizes = [32, 4], strides = [1, 1]} : vector<32x20xf32> to vector<32x4xf32>
      %c0_28 = arith.constant 0 : index
      %c0_29 = arith.constant 0 : index
      %47 = vector.load %arg8[%c0_28, %c0_29] : memref<32x4xf32, #tpu.memory_space<vmem>>, vector<32x4xf32>
      tpu.vector_store %arg8[%c0_28, %c0_29], %46 {strides = array<i32>} : memref<32x4xf32, #tpu.memory_space<vmem>>, vector<32x4xf32>,
      %cst_30 = arith.constant 0.000000e+00 : f32
      %48 = vector.broadcast %cst_30 : f32 to vector<32x16xf32>
      %c0_31 = arith.constant 0 : index
      %c0_32 = arith.constant 0 : index
      %49 = vector.load %arg10[%c0_31, %c0_32] : memref<32x16xf32, #tpu.memory_space<vmem>>, vector<32x16xf32>
      tpu.vector_store %arg10[%c0_31, %c0_32], %48 {strides = array<i32>} : memref<32x16xf32, #tpu.memory_space<vmem>>, vector<32x16xf32>,
      %cst_33 = arith.constant 0.000000e+00 : f32
      %50 = vector.broadcast %cst_33 : f32 to vector<32x1xf32>
      %c0_34 = arith.constant 0 : index
      %c0_35 = arith.constant 0 : index
      %51 = vector.load %arg11[%c0_34, %c0_35] : memref<32x1xf32, #tpu.memory_space<vmem>>, vector<32x1xf32>
      tpu.vector_store %arg11[%c0_34, %c0_35], %50 {strides = array<i32>} : memref<32x1xf32, #tpu.memory_space<vmem>>, vector<32x1xf32>,
    } else {
    }
    %c16_i32 = arith.constant 16 : i32
    %3 = arith.muli %arg1, %c16_i32 : i32
    %4 = tpu.assume_multiple %3, 16 : i32
    %5 = arith.index_cast %4 : i32 to index
    %c0 = arith.constant 0 : index
    %6 = vector.load %arg8[%5, %c0] : memref<32x4xf32, #tpu.memory_space<vmem>>, vector<16x4xf32>
    %7 = arith.index_cast %4 : i32 to index
    %c0_1 = arith.constant 0 : index
    %8 = vector.load %arg9[%7, %c0_1] : memref<32x16xf32, #tpu.memory_space<vmem>>, vector<16x16xf32>
    %c0_2 = arith.constant 0 : index
    %c0_3 = arith.constant 0 : index
    %9 = vector.load %arg8[%c0_2, %c0_3] : memref<32x4xf32, #tpu.memory_space<vmem>>, vector<32x4xf32>
    %cst = arith.constant dense<0.000000e+00> : vector<32x16xf32>
    %10 = tpu.matmul %9, %6, %cst {dimension_numbers = #tpu.dot_dimension_numbers<[1], [1], [0], [0], [0, 0, 1, 0], [], []>, precision = #tpu.contract_precision<fp32>} : vector<32x4xf32>, vector<16x4xf32>, vector<32x16xf32> -> vector<32x16xf32>
    %cst_4 = arith.constant dense<0xFF800000> : vector<16xf32>
    %11 = vector.multi_reduction <maximumf>, %10, %cst_4 [0] : vector<32x16xf32> to vector<16xf32>
    %12 = vector.shape_cast %11 : vector<16xf32> to vector<1x16xf32>
    %13 = vector.broadcast %12 : vector<1x16xf32> to vector<32x16xf32>
    %14 = arith.subf %10, %13 : vector<32x16xf32>
    %15 = math.exp %14 : vector<32x16xf32>
    %cst_5 = arith.constant dense<0.000000e+00> : vector<16xf32>
    %16 = vector.multi_reduction <add>, %15, %cst_5 [0] : vector<32x16xf32> to vector<16xf32>
    %17 = vector.shape_cast %16 : vector<16xf32> to vector<1x16xf32>
    %18 = tpu.reciprocal %17 {approx = true} : vector<1x16xf32> -> vector<1x16xf32>
    %19 = arith.mulf %17, %18 : vector<1x16xf32>
    %cst_6 = arith.constant 2.000000e+00 : f32
    %20 = vector.broadcast %cst_6 : f32 to vector<1x16xf32>
    %21 = arith.subf %20, %19 : vector<1x16xf32>
    %22 = arith.mulf %18, %21 : vector<1x16xf32>
    %23 = vector.broadcast %22 : vector<1x16xf32> to vector<32x16xf32>
    %24 = arith.mulf %15, %23 : vector<32x16xf32>
    %c0_7 = arith.constant 0 : index
    %c0_8 = arith.constant 0 : index
    %25 = vector.load %arg11[%c0_7, %c0_8] : memref<32x1xf32, #tpu.memory_space<vmem>>, vector<32x1xf32>
    %cst_9 = arith.constant dense<0.000000e+00> : vector<32xf32>
    %26 = vector.multi_reduction <add>, %24, %cst_9 [1] : vector<32x16xf32> to vector<32xf32>
    %27 = vector.shape_cast %26 : vector<32xf32> to vector<32x1xf32>
    %28 = arith.addf %25, %27 : vector<32x1xf32>
    %c0_10 = arith.constant 0 : index
    %c0_11 = arith.constant 0 : index
    %29 = vector.load %arg11[%c0_10, %c0_11] : memref<32x1xf32, #tpu.memory_space<vmem>>, vector<32x1xf32>
    tpu.vector_store %arg11[%c0_10, %c0_11], %28 {strides = array<i32>} : memref<32x1xf32, #tpu.memory_space<vmem>>, vector<32x1xf32>,
    %c0_12 = arith.constant 0 : index
    %c0_13 = arith.constant 0 : index
    %30 = vector.load %arg10[%c0_12, %c0_13] : memref<32x16xf32, #tpu.memory_space<vmem>>, vector<32x16xf32>
    %cst_14 = arith.constant dense<0.000000e+00> : vector<32x16xf32>
    %31 = tpu.matmul %24, %8, %cst_14 {dimension_numbers = #tpu.dot_dimension_numbers<[1], [0], [0], [1], [0, 0, 1, 1], [], []>, precision = #tpu.contract_precision<fp32>} : vector<32x16xf32>, vector<16x16xf32>, vector<32x16xf32> -> vector<32x16xf32>
    %32 = arith.addf %30, %31 : vector<32x16xf32>
    %c0_15 = arith.constant 0 : index
    %c0_16 = arith.constant 0 : index
    %33 = vector.load %arg10[%c0_15, %c0_16] : memref<32x16xf32, #tpu.memory_space<vmem>>, vector<32x16xf32>
    tpu.vector_store %arg10[%c0_15, %c0_16], %32 {strides = array<i32>} : memref<32x16xf32, #tpu.memory_space<vmem>>, vector<32x16xf32>,
    %c1_i32 = arith.constant 1 : i32
    %34 = arith.cmpi eq, %arg1, %c1_i32 : i32
    %35 = arith.extui %34 : i1 to i32
    %c0_i32_17 = arith.constant 0 : i32
    %36 = arith.cmpi ne, %35, %c0_i32_17 : i32
    scf.if %36 {
      %c0_18 = arith.constant 0 : index
      %c0_19 = arith.constant 0 : index
      %c0_20 = arith.constant 0 : index
      %37 = vector.load %arg2[%c0_18, %c0_19, %c0_20] : memref<1x32x16xf32, #tpu.memory_space<vmem>>, vector<1x32x16xf32>
      %38 = vector.shape_cast %37 : vector<1x32x16xf32> to vector<32x16xf32>
      %c0_21 = arith.constant 0 : index
      %c0_22 = arith.constant 0 : index
      %39 = vector.load %arg10[%c0_21, %c0_22] : memref<32x16xf32, #tpu.memory_space<vmem>>, vector<32x16xf32>
      %c0_23 = arith.constant 0 : index
      %c0_24 = arith.constant 0 : index
      %40 = vector.load %arg11[%c0_23, %c0_24] : memref<32x1xf32, #tpu.memory_space<vmem>>, vector<32x1xf32>
      %cst_25 = arith.constant 9.99999971E-10 : f32
      %41 = vector.broadcast %cst_25 : f32 to vector<32x1xf32>
      %42 = arith.addf %41, %40 : vector<32x1xf32>
      %43 = tpu.reciprocal %42 {approx = true} : vector<32x1xf32> -> vector<32x1xf32>
      %44 = arith.mulf %42, %43 : vector<32x1xf32>
      %cst_26 = arith.constant 2.000000e+00 : f32
      %45 = vector.broadcast %cst_26 : f32 to vector<32x1xf32>
      %46 = arith.subf %45, %44 : vector<32x1xf32>
      %47 = arith.mulf %43, %46 : vector<32x1xf32>
      %48 = vector.broadcast %47 : vector<32x1xf32> to vector<32x16xf32>
      %49 = arith.mulf %39, %48 : vector<32x16xf32>
      %50 = arith.subf %38, %49 : vector<32x16xf32>
      %c0_27 = arith.constant 0 : index
      %c0_28 = arith.constant 0 : index
      %51 = vector.load %arg5[%c0_27, %c0_28] : memref<16x16xf32, #tpu.memory_space<vmem>>, vector<16x16xf32>
      %cst_29 = arith.constant dense<0.000000e+00> : vector<32x16xf32>
      %52 = tpu.matmul %50, %51, %cst_29 {dimension_numbers = #tpu.dot_dimension_numbers<[1], [0], [0], [1], [0, 0, 1, 1], [], []>, precision = #tpu.contract_precision<fp32>} : vector<32x16xf32>, vector<16x16xf32>, vector<32x16xf32> -> vector<32x16xf32>
      %c0_30 = arith.constant 0 : index
      %c0_31 = arith.constant 0 : index
      %53 = vector.load %arg6[%c0_30, %c0_31] : memref<1x16xf32, #tpu.memory_space<vmem>>, vector<1x16xf32>
      %54 = vector.broadcast %53 : vector<1x16xf32> to vector<32x16xf32>
      %55 = arith.addf %52, %54 : vector<32x16xf32>
      %cst_32 = arith.constant 0.000000e+00 : f32
      %56 = vector.broadcast %cst_32 : f32 to vector<32x16xf32>
      %57 = arith.maximumf %55, %56 : vector<32x16xf32>
      %58 = arith.addf %38, %57 : vector<32x16xf32>
      %c0_33 = arith.constant 0 : index
      %c0_34 = arith.constant 0 : index
      %c0_35 = arith.constant 0 : index
      %59 = vector.load %arg7[%c0_33, %c0_34, %c0_35] : memref<1x32x16xf32, #tpu.memory_space<vmem>>, vector<1x32x16xf32>
      %60 = vector.shape_cast %59 : vector<1x32x16xf32> to vector<32x16xf32>
      %61 = vector.shape_cast %58 : vector<32x16xf32> to vector<1x32x16xf32>
      tpu.vector_store %arg7[%c0_33, %c0_34, %c0_35], %61 {strides = array<i32>} : memref<1x32x16xf32, #tpu.memory_space<vmem>>, vector<1x32x16xf32>,
    } else {
    }
    return
  }
  func.func @transform_0(%arg0: i32, %arg1: i32) -> (i32, i32, i32) {
    %c0_i32 = arith.constant 0 : i32
    %c0_i32_0 = arith.constant 0 : i32
    %c0_i32_1 = arith.constant 0 : i32
    return %arg0, %c0_i32, %c0_i32_0 : i32, i32, i32
  }
  func.func @transform_1(%arg0: i32, %arg1: i32) -> (i32, i32) {
    %c0_i32 = arith.constant 0 : i32
    %c0_i32_0 = arith.constant 0 : i32
    %c0_i32_1 = arith.constant 0 : i32
    return %c0_i32, %c0_i32_0 : i32, i32
  }
  func.func @transform_2(%arg0: i32, %arg1: i32) -> (i32, i32) {
    %c0_i32 = arith.constant 0 : i32
    %c0_i32_0 = arith.constant 0 : i32
    %c0_i32_1 = arith.constant 0 : i32
    return %c0_i32, %c0_i32_0 : i32, i32
  }
  func.func @transform_3(%arg0: i32, %arg1: i32) -> (i32, i32) {
    %c0_i32 = arith.constant 0 : i32
    %c0_i32_0 = arith.constant 0 : i32
    %c0_i32_1 = arith.constant 0 : i32
    return %c0_i32, %c0_i32_0 : i32, i32
  }
  func.func @transform_4(%arg0: i32, %arg1: i32) -> (i32, i32) {
    %c0_i32 = arith.constant 0 : i32
    %c0_i32_0 = arith.constant 0 : i32
    %c0_i32_1 = arith.constant 0 : i32
    return %c0_i32, %c0_i32_0 : i32, i32
  }
  func.func @transform_5(%arg0: i32, %arg1: i32) -> (i32, i32, i32) {
    %c0_i32 = arith.constant 0 : i32
    %c0_i32_0 = arith.constant 0 : i32
    %c0_i32_1 = arith.constant 0 : i32
    return %arg0, %c0_i32, %c0_i32_0 : i32, i32, i32
  }
}

</mosaic_0001>

<llo_original>
// kernel: tpu_custom_call.1
$region0: #{tpu_custom_call.1}
  #allocation0 [shape = 'u32[]', space=smem, size = 0x4, offset = 0x4, fixed_abs, tag = 'smem constant byte address 0x4 - core index']
  #allocation1 [shape = 'u32[144,128]{1,0:T(1,128)}', space=vmem, size = 0x12000, scoped, tag = 'internal scratch']
  #allocation2 [shape = 'f32[32,4]{1,0:T(8,128)}', space=vmem, size = 0x4000, scoped, tag = 'scratch operand']
  #allocation3 [shape = 'f32[32,16]{1,0:T(8,128)}', space=vmem, size = 0x4000, scoped, tag = 'scratch operand']
  #allocation4 [shape = 'f32[32,16]{1,0:T(8,128)}', space=vmem, size = 0x4000, scoped, tag = 'scratch operand']
  #allocation5 [shape = 'f32[32,1]{1,0:T(8,128)}', space=vmem, size = 0x4000, scoped, tag = 'scratch operand']
  %s0 = inlined_call_operand.vmem [shape: f32[2,32,16], index: 0, kind: input, shape index: {}]
  %s1 = inlined_call_operand.vmem [shape: f32[16,20], index: 1, kind: input, shape index: {}]
  %s2 = inlined_call_operand.vmem [shape: f32[1,16], index: 2, kind: input, shape index: {}]
  %s3 = inlined_call_operand.vmem [shape: f32[16,16], index: 3, kind: input, shape index: {}]
  %s4 = inlined_call_operand.vmem [shape: f32[1,16], index: 4, kind: input, shape index: {}]
  %s5 = inlined_call_operand.vmem [shape: f32[2,32,16], index: 5, kind: output, shape index: {}]
  %s6 = sld [smem:[#allocation0]]
  $region61: #{tpu_custom_call.1} parent=0
    _
  %s8 = ssub.s32 1, %s6
  %s9 = scalar_select 0, %s8, %s6
  loop: start=0, step=1, limit=6
  $region2: #{tpu_custom_call.1} parent=0 // loop_pre_header
    _
  $region3: #{tpu_custom_call.1} parent=0 // loop_header
    %s11 = sphi 0, %s15
    %p12 = scmp.ge.s32.totalorder %s11, 6
    %s18 = sphi 0, %s30
    %s19 = sphi 0, %s26
    %s20 = sphi 0, %s18
    %s21 = sphi 0, %s19
    %s22 = sphi 0, %s20
    %s23 = sphi 0, %s21
    %s33 = sphi 0, %s35
    %s36 = sphi 0, %s33
    %s37 = sphi 0, %s36
    %s53 = sphi 0, %s37
    %s57 = sphi 0, %s57
    %s59 = sphi 0, %s57
    %s60 = sphi 0, %s59
    %s74 = sphi 0, %s60
    %s78 = sphi 0, %s78
    %s80 = sphi 0, %s78
    %s81 = sphi 0, %s80
    %s95 = sphi 0, %s81
    %s99 = sphi 0, %s99
    %s101 = sphi 0, %s99
    %s102 = sphi 0, %s101
    %s116 = sphi 0, %s102
    %s120 = sphi 0, %s120
    %s122 = sphi 0, %s120
    %s123 = sphi 0, %s122
    %s137 = sphi 0, %s123
    %s143 = sphi 0, %s145
    %s146 = sphi 0, %s143
    %s147 = sphi 0, %s146
    %s163 = sphi 0, %s147
  $region4: #{tpu_custom_call.1} parent=0 // loop_header_branch
    %14 = sbr.rel (%p12) target = $region8
  $region5: #{tpu_custom_call.1} parent=0 // loop_body
    %s16 = ssub.s32 %s11, 1
    %s17 = ssub.s32 %s11, 2
    %s24 = sadd.s32 1, %s19
    %p25 = scmp.ge.s32.totalorder %s24, 2
    %s26 = scalar_select %p25, 0, %s24
    %s27 = sadd.s32 1, %s18
    %s28 = scalar_select %p25, %s27, %s18
    %p29 = scmp.ge.s32.totalorder %s28, 2
    %s30 = scalar_select %p29, 0, %s28
    %s31 = ssub.s32 %s18, %s30
    %p32 = scmp.eq.s32.totalorder %s31, 0
    %s34 = sadd.s32 %s33, 1
    %s35 = scalar_select %p32, %s33, %s34
    %p38 = pneg %p32
    %p39 = scmp.eq.s32.totalorder %s11, 3
    %p40 = por %p38, %p39
    %p41 = scmp.ne.s32.totalorder %s33, %s36
    %p42 = scmp.eq.s32.totalorder %s11, 0
    %p43 = por %p41, %p42
    %p44 = scmp.ne.s32.totalorder %s33, %s36
    %p45 = scmp.eq.s32.totalorder %s16, 3
    %p46 = por %p44, %p45
    %p47 = scmp.ne.s32.totalorder %s36, %s37
    %p48 = scmp.eq.s32.totalorder %s16, 0
    %p49 = por %p47, %p48
    %p50 = scmp.ne.s32.totalorder %s36, %s37
    %p51 = scmp.eq.s32.totalorder %s17, 3
    %p52 = por %p50, %p51
    %p54 = scmp.ne.s32.totalorder %s37, %s53
    %p55 = scmp.eq.s32.totalorder %s17, 0
    %p56 = por %p54, %p55
    %s58 = sadd.s32 %s57, 1
    %p61 = scmp.eq.s32.totalorder %s11, 3
    %p62 = scmp.ne.s32.totalorder %s57, %s59
    %p63 = scmp.eq.s32.totalorder %s11, 0
    %p64 = por %p62, %p63
    %p65 = scmp.ne.s32.totalorder %s57, %s59
    %p66 = scmp.eq.s32.totalorder %s16, 3
    %p67 = por %p65, %p66
    %p68 = scmp.ne.s32.totalorder %s59, %s60
    %p69 = scmp.eq.s32.totalorder %s16, 0
    %p70 = por %p68, %p69
    %p71 = scmp.ne.s32.totalorder %s59, %s60
    %p72 = scmp.eq.s32.totalorder %s17, 3
    %p73 = por %p71, %p72
    %p75 = scmp.ne.s32.totalorder %s60, %s74
    %p76 = scmp.eq.s32.totalorder %s17, 0
    %p77 = por %p75, %p76
    %s79 = sadd.s32 %s78, 1
    %p82 = scmp.eq.s32.totalorder %s11, 3
    %p83 = scmp.ne.s32.totalorder %s78, %s80
    %p84 = scmp.eq.s32.totalorder %s11, 0
    %p85 = por %p83, %p84
    %p86 = scmp.ne.s32.totalorder %s78, %s80
    %p87 = scmp.eq.s32.totalorder %s16, 3
    %p88 = por %p86, %p87
    %p89 = scmp.ne.s32.totalorder %s80, %s81
    %p90 = scmp.eq.s32.totalorder %s16, 0
    %p91 = por %p89, %p90
    %p92 = scmp.ne.s32.totalorder %s80, %s81
    %p93 = scmp.eq.s32.totalorder %s17, 3
    %p94 = por %p92, %p93
    %p96 = scmp.ne.s32.totalorder %s81, %s95
    %p97 = scmp.eq.s32.totalorder %s17, 0
    %p98 = por %p96, %p97
    %s100 = sadd.s32 %s99, 1
    %p103 = scmp.eq.s32.totalorder %s11, 3
    %p104 = scmp.ne.s32.totalorder %s99, %s101
    %p105 = scmp.eq.s32.totalorder %s11, 0
    %p106 = por %p104, %p105
    %p107 = scmp.ne.s32.totalorder %s99, %s101
    %p108 = scmp.eq.s32.totalorder %s16, 3
    %p109 = por %p107, %p108
    %p110 = scmp.ne.s32.totalorder %s101, %s102
    %p111 = scmp.eq.s32.totalorder %s16, 0
    %p112 = por %p110, %p111
    %p113 = scmp.ne.s32.totalorder %s101, %s102
    %p114 = scmp.eq.s32.totalorder %s17, 3
    %p115 = por %p113, %p114
    %p117 = scmp.ne.s32.totalorder %s102, %s116
    %p118 = scmp.eq.s32.totalorder %s17, 0
    %p119 = por %p117, %p118
    %s121 = sadd.s32 %s120, 1
    %p124 = scmp.eq.s32.totalorder %s11, 3
    %p125 = scmp.ne.s32.totalorder %s120, %s122
    %p126 = scmp.eq.s32.totalorder %s11, 0
    %p127 = por %p125, %p126
    %p128 = scmp.ne.s32.totalorder %s120, %s122
    %p129 = scmp.eq.s32.totalorder %s16, 3
    %p130 = por %p128, %p129
    %p131 = scmp.ne.s32.totalorder %s122, %s123
    %p132 = scmp.eq.s32.totalorder %s16, 0
    %p133 = por %p131, %p132
    %p134 = scmp.ne.s32.totalorder %s122, %s123
    %p135 = scmp.eq.s32.totalorder %s17, 3
    %p136 = por %p134, %p135
    %p138 = scmp.ne.s32.totalorder %s123, %s137
    %p139 = scmp.eq.s32.totalorder %s17, 0
    %p140 = por %p138, %p139
    %s141 = ssub.s32 %s18, %s30
    %p142 = scmp.eq.s32.totalorder %s141, 0
    %s144 = sadd.s32 %s143, 1
    %s145 = scalar_select %p142, %s143, %s144
    %p148 = pneg %p142
    %p149 = scmp.eq.s32.totalorder %s11, 3
    %p150 = por %p148, %p149
    %p151 = scmp.ne.s32.totalorder %s143, %s146
    %p152 = scmp.eq.s32.totalorder %s11, 0
    %p153 = por %p151, %p152
    %p154 = scmp.ne.s32.totalorder %s143, %s146
    %p155 = scmp.eq.s32.totalorder %s16, 3
    %p156 = por %p154, %p155
    %p157 = scmp.ne.s32.totalorder %s146, %s147
    %p158 = scmp.eq.s32.totalorder %s16, 0
    %p159 = por %p157, %p158
    %p160 = scmp.ne.s32.totalorder %s146, %s147
    %p161 = scmp.eq.s32.totalorder %s17, 3
    %p162 = por %p160, %p161
    %p164 = scmp.ne.s32.totalorder %s147, %s163
    %p165 = scmp.eq.s32.totalorder %s17, 0
    %p166 = por %p164, %p165
    %p167 = scmp.le.s32.totalorder 1, %s11
    %p168 = scmp.lt.s32.totalorder %s11, 5
    %p169 = pnand %p167, %p168
    %p170 = pneg %p169
    // Predicated region
    $region9: #{tpu_custom_call.1} parent=5 // pred_check
      _
    $region10: #{tpu_custom_call.1} parent=5 // pred_check_branch
      %172 = sbr.rel (%p169) target = $region12
    $region11: #{tpu_custom_call.1} parent=5 // pred_region
      %s173 = ssub.s32 %s11, 1
      // Predicated region
      $region13: #{tpu_custom_call.1} parent=11 // pred_check
        %p174 = pneg %p70
      $region14: #{tpu_custom_call.1} parent=11 // pred_check_branch
        %176 = sbr.rel (%p174) target = $region16
      $region15: #{tpu_custom_call.1} parent=11 // pred_region
        _
      $region16: #{tpu_custom_call.1} parent=11 // pred_fallthru
        _
      // Predicated region
      $region17: #{tpu_custom_call.1} parent=11 // pred_check
        %p177 = pneg %p91
      $region18: #{tpu_custom_call.1} parent=11 // pred_check_branch
        %179 = sbr.rel (%p177) target = $region20
      $region19: #{tpu_custom_call.1} parent=11 // pred_region
        _
      $region20: #{tpu_custom_call.1} parent=11 // pred_fallthru
        _
      // Predicated region
      $region21: #{tpu_custom_call.1} parent=11 // pred_check
        %p180 = pneg %p112
      $region22: #{tpu_custom_call.1} parent=11 // pred_check_branch
        %182 = sbr.rel (%p180) target = $region24
      $region23: #{tpu_custom_call.1} parent=11 // pred_region
        _
      $region24: #{tpu_custom_call.1} parent=11 // pred_fallthru
        _
      // Predicated region
      $region25: #{tpu_custom_call.1} parent=11 // pred_check
        %p183 = pneg %p133
      $region26: #{tpu_custom_call.1} parent=11 // pred_check_branch
        %185 = sbr.rel (%p183) target = $region28
      $region27: #{tpu_custom_call.1} parent=11 // pred_region
        _
      $region28: #{tpu_custom_call.1} parent=11 // pred_fallthru
        _
    $region12: #{tpu_custom_call.1} parent=5 // pred_fallthru
      _
    %p186 = scmp.lt.s32.totalorder %s11, 4
    // Predicated region
    $region29: #{tpu_custom_call.1} parent=5 // pred_check
      %p187 = pneg %p186
    $region30: #{tpu_custom_call.1} parent=5 // pred_check_branch
      %189 = sbr.rel (%p187) target = $region32
    $region31: #{tpu_custom_call.1} parent=5 // pred_region
      // Predicated region
      $region33: #{tpu_custom_call.1} parent=31 // pred_check
        %p190 = pneg %p43
      $region34: #{tpu_custom_call.1} parent=31 // pred_check_branch
        %192 = sbr.rel (%p190) target = $region36
      $region35: #{tpu_custom_call.1} parent=31 // pred_region
        %p193 = scmp.lt.s32.totalorder %s18, 1
        %s194 = scalar_select %p193, %s18, 1
        %s195 = smul.addr %s194, 4
        %s196 = smul.addr %s195, 8
        %s197 = scalar_lea.vmem %s0, %s196
      $region36: #{tpu_custom_call.1} parent=31 // pred_fallthru
        _
    $region32: #{tpu_custom_call.1} parent=5 // pred_fallthru
      _
    %p198 = scmp.le.s32.totalorder 1, %s11
    %p199 = scmp.lt.s32.totalorder %s11, 5
    %p200 = pnand %p198, %p199
    %p201 = pneg %p200
    // Predicated region
    $region37: #{tpu_custom_call.1} parent=5 // pred_check
      _
    $region38: #{tpu_custom_call.1} parent=5 // pred_check_branch
      %203 = sbr.rel (%p200) target = $region40
    $region39: #{tpu_custom_call.1} parent=5 // pred_region
      %s204 = ssub.s32 %s11, 1
      %p205 = scmp.lt.s32.totalorder %s20, 1
      %s206 = scalar_select %p205, %s20, 1
      %s207 = smul.addr %s206, 4
      %s208 = smul.addr %s207, 8
      %s209 = scalar_lea.vmem %s0, %s208
      %p210 = pneg %p49
      %p211 = pneg %p46
      %p212 = pneg %p70
      %p213 = pneg %p67
      %p214 = pneg %p91
      %p215 = pneg %p88
      %p216 = pneg %p112
      %p217 = pneg %p109
      %p218 = pneg %p133
      %p219 = pneg %p130
      %p220 = pneg %p159
      %p221 = pneg %p156
      %p222 = scmp.lt.s32.totalorder %s20, 1
      %s223 = scalar_select %p222, %s20, 1
      %s224 = smul.addr %s223, 4
      %s225 = smul.addr %s224, 8
      %s226 = scalar_lea.vmem %s5, %s225
      %p227 = scmp.lt.s32.totalorder %s20, 1
      %s228 = scalar_select %p227, %s20, 1
      %s229 = smul.addr %s228, 4
      %s230 = smul.addr %s229, 8
      %s231 = scalar_lea.vmem %s0, %s230
      %p232 = scmp.lt.s32.totalorder %s20, 1
      %s233 = scalar_select %p232, %s20, 1
      %s234 = smul.addr %s233, 4
      %s235 = smul.addr %s234, 8
      %s236 = scalar_lea.vmem %s5, %s235
      %p237 = scmp.eq.s32.totalorder %s21, 0
      // Predicated region
      $region41: #{tpu_custom_call.1} parent=39 // pred_check
        %p238 = pneg %p237
      $region42: #{tpu_custom_call.1} parent=39 // pred_check_branch
        %240 = sbr.rel (%p238) target = $region44
      $region43: #{tpu_custom_call.1} parent=39 // pred_region
        %v241 = vld [vmem:[%s231] sm:$0xff]
        %v242 = vld [vmem:[%s231 + $0x8] sm:$0xff]
        %v243 = vld [vmem:[%s231 + $0x10] sm:$0xff]
        %v244 = vld [vmem:[%s231 + $0x18] sm:$0xff]
        %v245 = vld [vmem:[%s1] sm:$0xff]
        %v246 = vld [vmem:[%s1 + $0x8] sm:$0xff]
        %vm247 = vcmask 130048
        %v249 = vsel %vm247, %v241, 0
        %v252 = vsel %vm247, %v242, 0
        %v255 = vsel %vm247, %v243, 0
        %v258 = vsel %vm247, %v244, 0
        %260 = vmatprep.subr.mxu0 0.0
        %v261 = vand.u32 %v245, 4294901760
        %262 = vmatpush1.msra.mxu0 %v261
        %263 = vmatprep.subr.mxu0 0.0
        %v264 = vand.u32 %v246, 4294901760
        %265 = vmatpush1.msra.mxu0 %v264
        %266 = vmatprep.subr.mxu0 0.0
        %267 = vmatpush1.msra.mxu0 0.0
        %268 = vmatprep.subr.mxu0 0.0
        %269 = vmatpush1.msra.mxu0 0.0
        %270 = vmatprep.subr.mxu0 0.0
        %271 = vmatpush1.msra.mxu0 0.0
        %272 = vmatprep.subr.mxu0 0.0
        %273 = vmatpush1.msra.mxu0 0.0
        %274 = vmatprep.subr.mxu0 0.0
        %275 = vmatpush1.msra.mxu0 0.0
        %276 = vmatprep.subr.mxu0 0.0
        %277 = vmatpush1.msra.mxu0 0.0
        %278 = vmatprep.subr.mxu0 0.0
        %279 = vmatpush1.msra.mxu0 0.0
        %280 = vmatprep.subr.mxu0 0.0
        %281 = vmatpush1.msra.mxu0 0.0
        %282 = vmatprep.subr.mxu0 0.0
        %283 = vmatpush1.msra.mxu0 0.0
        %284 = vmatprep.subr.mxu0 0.0
        %285 = vmatpush1.msra.mxu0 0.0
        %286 = vmatprep.subr.mxu0 0.0
        %287 = vmatpush1.msra.mxu0 0.0
        %288 = vmatprep.subr.mxu0 0.0
        %289 = vmatpush1.msra.mxu0 0.0
        %290 = vmatprep.subr.mxu0 0.0
        %291 = vmatpush1.msra.mxu0 0.0
        %292 = vmatprep.subr.mxu0 0.0
        %293 = vmatpush1.msra.mxu0 0.0
        %294 = vmatprep.subr.mxu0 0.0
        %295 = vmatpush1.msra.mxu0 0.0
        %296 = vmatprep.subr.mxu0 0.0
        %297 = vmatpush1.msra.mxu0 0.0
        %298 = vmatprep.subr.mxu0 0.0
        %299 = vmatpush1.msra.mxu0 0.0
        %300 = vmatprep.subr.mxu0 0.0
        %301 = vmatpush1.msra.mxu0 0.0
        %302 = vmatprep.subr.mxu0 0.0
        %303 = vmatpush1.msra.mxu0 0.0
        %304 = vmatprep.subr.mxu0 0.0
        %305 = vmatpush1.msra.mxu0 0.0
        %306 = vmatprep.subr.mxu0 0.0
        %307 = vmatpush1.msra.mxu0 0.0
        %308 = vmatprep.subr.mxu0 0.0
        %309 = vmatpush1.msra.mxu0 0.0
        %310 = vmatprep.subr.mxu0 0.0
        %311 = vmatpush1.msra.mxu0 0.0
        %312 = vmatprep.subr.mxu0 0.0
        %313 = vmatpush1.msra.mxu0 0.0
        %314 = vmatprep.subr.mxu0 0.0
        %315 = vmatpush1.msra.mxu0 0.0
        %316 = vmatprep.subr.mxu0 0.0
        %317 = vmatpush1.msra.mxu0 0.0
        %318 = vmatprep.subr.mxu0 0.0
        %319 = vmatpush1.msra.mxu0 0.0
        %320 = vmatprep.subr.mxu0 0.0
        %321 = vmatpush1.msra.mxu0 0.0
        %322 = vmatprep.subr.mxu0 0.0
        %323 = vmatpush1.msra.mxu0 0.0
        %324 = vmatprep.subr.mxu0 0.0
        %325 = vmatpush1.msra.mxu0 0.0
        %326 = vmatprep.mubr.f32.mxu0 0.0
        %v327 = vand.u32 %v249, 4294901760
        %v328 = vsub.f32 %v249, %v327
        %v329 = vand.u32 %v328, 4294901760
        %v330 = vsub.f32 %v328, %v329
        %v331 = vand.u32 %v330, 4294901760
        %332 = vmatmul.mubr.f32.gmra.mrb[0].mxu0 %v331
        %v333 = vpop.f32.mrb[0].mxu0
        %v334 = vadd.f32 0.0, %v333
        %v335 = vpop.f32.mrb[0].mxu0
        %336 = vmatprep.mubr.f32.mxu0 0.0
        %v337 = vand.u32 %v252, 4294901760
        %v338 = vsub.f32 %v252, %v337
        %v339 = vand.u32 %v338, 4294901760
        %v340 = vsub.f32 %v338, %v339
        %v341 = vand.u32 %v340, 4294901760
        %342 = vmatmul.mubr.f32.gmra.mrb[0].mxu0 %v341
        %v343 = vpop.f32.mrb[0].mxu0
        %v344 = vadd.f32 0.0, %v343
        %v345 = vpop.f32.mrb[0].mxu0
        %346 = vmatprep.mubr.f32.mxu0 0.0
        %v347 = vand.u32 %v255, 4294901760
        %v348 = vsub.f32 %v255, %v347
        %v349 = vand.u32 %v348, 4294901760
        %v350 = vsub.f32 %v348, %v349
        %v351 = vand.u32 %v350, 4294901760
        %352 = vmatmul.mubr.f32.gmra.mrb[0].mxu0 %v351
        %v353 = vpop.f32.mrb[0].mxu0
        %v354 = vadd.f32 0.0, %v353
        %v355 = vpop.f32.mrb[0].mxu0
        %356 = vmatprep.mubr.f32.mxu0 0.0
        %v357 = vand.u32 %v258, 4294901760
        %v358 = vsub.f32 %v258, %v357
        %v359 = vand.u32 %v358, 4294901760
        %v360 = vsub.f32 %v358, %v359
        %v361 = vand.u32 %v360, 4294901760
        %362 = vmatmul.mubr.f32.gmra.mrb[0].mxu0 %v361
        %v363 = vpop.f32.mrb[0].mxu0
        %v364 = vadd.f32 0.0, %v363
        %v365 = vpop.f32.mrb[0].mxu0
        %366 = vdwg.mxu0
        %367 = vmatprep.subr.mxu0 0.0
        %v368 = vand.u32 %v245, 4294901760
        %v369 = vsub.f32 %v245, %v368
        %v370 = vand.u32 %v369, 4294901760
        %v371 = vsub.f32 %v369, %v370
        %v372 = vand.u32 %v371, 4294901760
        %373 = vmatpush1.msra.mxu0 %v372
        %374 = vmatprep.subr.mxu0 0.0
        %v375 = vand.u32 %v246, 4294901760
        %v376 = vsub.f32 %v246, %v375
        %v377 = vand.u32 %v376, 4294901760
        %v378 = vsub.f32 %v376, %v377
        %v379 = vand.u32 %v378, 4294901760
        %380 = vmatpush1.msra.mxu0 %v379
        %381 = vmatprep.subr.mxu0 0.0
        %382 = vmatpush1.msra.mxu0 0.0
        %383 = vmatprep.subr.mxu0 0.0
        %384 = vmatpush1.msra.mxu0 0.0
        %385 = vmatprep.subr.mxu0 0.0
        %386 = vmatpush1.msra.mxu0 0.0
        %387 = vmatprep.subr.mxu0 0.0
        %388 = vmatpush1.msra.mxu0 0.0
        %389 = vmatprep.subr.mxu0 0.0
        %390 = vmatpush1.msra.mxu0 0.0
        %391 = vmatprep.subr.mxu0 0.0
        %392 = vmatpush1.msra.mxu0 0.0
        %393 = vmatprep.subr.mxu0 0.0
        %394 = vmatpush1.msra.mxu0 0.0
        %395 = vmatprep.subr.mxu0 0.0
        %396 = vmatpush1.msra.mxu0 0.0
        %397 = vmatprep.subr.mxu0 0.0
        %398 = vmatpush1.msra.mxu0 0.0
        %399 = vmatprep.subr.mxu0 0.0
        %400 = vmatpush1.msra.mxu0 0.0
        %401 = vmatprep.subr.mxu0 0.0
        %402 = vmatpush1.msra.mxu0 0.0
        %403 = vmatprep.subr.mxu0 0.0
        %404 = vmatpush1.msra.mxu0 0.0
        %405 = vmatprep.subr.mxu0 0.0
        %406 = vmatpush1.msra.mxu0 0.0
        %407 = vmatprep.subr.mxu0 0.0
        %408 = vmatpush1.msra.mxu0 0.0
        %409 = vmatprep.subr.mxu0 0.0
        %410 = vmatpush1.msra.mxu0 0.0
        %411 = vmatprep.subr.mxu0 0.0
        %412 = vmatpush1.msra.mxu0 0.0
        %413 = vmatprep.subr.mxu0 0.0
        %414 = vmatpush1.msra.mxu0 0.0
        %415 = vmatprep.subr.mxu0 0.0
        %416 = vmatpush1.msra.mxu0 0.0
        %417 = vmatprep.subr.mxu0 0.0
        %418 = vmatpush1.msra.mxu0 0.0
        %419 = vmatprep.subr.mxu0 0.0
        %420 = vmatpush1.msra.mxu0 0.0
        %421 = vmatprep.subr.mxu0 0.0
        %422 = vmatpush1.msra.mxu0 0.0
        %423 = vmatprep.subr.mxu0 0.0
        %424 = vmatpush1.msra.mxu0 0.0
        %425 = vmatprep.subr.mxu0 0.0
        %426 = vmatpush1.msra.mxu0 0.0
        %427 = vmatprep.subr.mxu0 0.0
        %428 = vmatpush1.msra.mxu0 0.0
        %429 = vmatprep.subr.mxu0 0.0
        %430 = vmatpush1.msra.mxu0 0.0
        %431 = vmatprep.subr.mxu0 0.0
        %432 = vmatpush1.msra.mxu0 0.0
        %433 = vmatprep.subr.mxu0 0.0
        %434 = vmatpush1.msra.mxu0 0.0
        %435 = vmatprep.subr.mxu0 0.0
        %436 = vmatpush1.msra.mxu0 0.0
        %437 = vmatprep.subr.mxu0 0.0
        %438 = vmatpush1.msra.mxu0 0.0
        %439 = vmatprep.subr.mxu0 0.0
        %440 = vmatpush1.msra.mxu0 0.0
        %441 = vmatprep.mubr.f32.mxu0 0.0
        %v442 = vand.u32 %v249, 4294901760
        %443 = vmatmul.mubr.f32.gmra.mrb[0].mxu0 %v442
        %v444 = vpop.f32.mrb[0].mxu0
        %v445 = vadd.f32 %v334, %v444
        %v446 = vpop.f32.mrb[0].mxu0
        %447 = vmatprep.mubr.f32.mxu0 0.0
        %v448 = vand.u32 %v252, 4294901760
        %449 = vmatmul.mubr.f32.gmra.mrb[0].mxu0 %v448
        %v450 = vpop.f32.mrb[0].mxu0
        %v451 = vadd.f32 %v344, %v450
        %v452 = vpop.f32.mrb[0].mxu0
        %453 = vmatprep.mubr.f32.mxu0 0.0
        %v454 = vand.u32 %v255, 4294901760
        %455 = vmatmul.mubr.f32.gmra.mrb[0].mxu0 %v454
        %v456 = vpop.f32.mrb[0].mxu0
        %v457 = vadd.f32 %v354, %v456
        %v458 = vpop.f32.mrb[0].mxu0
        %459 = vmatprep.mubr.f32.mxu0 0.0
        %v460 = vand.u32 %v258, 4294901760
        %461 = vmatmul.mubr.f32.gmra.mrb[0].mxu0 %v460
        %v462 = vpop.f32.mrb[0].mxu0
        %v463 = vadd.f32 %v364, %v462
        %v464 = vpop.f32.mrb[0].mxu0
        %465 = vdwg.mxu0
        %466 = vmatprep.subr.mxu0 0.0
        %v467 = vand.u32 %v245, 4294901760
        %v468 = vsub.f32 %v245, %v467
        %469 = vmatpush1.msra.mxu0 %v468
        %470 = vmatprep.subr.mxu0 0.0
        %v471 = vand.u32 %v246, 4294901760
        %v472 = vsub.f32 %v246, %v471
        %473 = vmatpush1.msra.mxu0 %v472
        %474 = vmatprep.subr.mxu0 0.0
        %475 = vmatpush1.msra.mxu0 0.0
        %476 = vmatprep.subr.mxu0 0.0
        %477 = vmatpush1.msra.mxu0 0.0
        %478 = vmatprep.subr.mxu0 0.0
        %479 = vmatpush1.msra.mxu0 0.0
        %480 = vmatprep.subr.mxu0 0.0
        %481 = vmatpush1.msra.mxu0 0.0
        %482 = vmatprep.subr.mxu0 0.0
        %483 = vmatpush1.msra.mxu0 0.0
        %484 = vmatprep.subr.mxu0 0.0
        %485 = vmatpush1.msra.mxu0 0.0
        %486 = vmatprep.subr.mxu0 0.0
        %487 = vmatpush1.msra.mxu0 0.0
        %488 = vmatprep.subr.mxu0 0.0
        %489 = vmatpush1.msra.mxu0 0.0
        %490 = vmatprep.subr.mxu0 0.0
        %491 = vmatpush1.msra.mxu0 0.0
        %492 = vmatprep.subr.mxu0 0.0
        %493 = vmatpush1.msra.mxu0 0.0
        %494 = vmatprep.subr.mxu0 0.0
        %495 = vmatpush1.msra.mxu0 0.0
        %496 = vmatprep.subr.mxu0 0.0
        %497 = vmatpush1.msra.mxu0 0.0
        %498 = vmatprep.subr.mxu0 0.0
        %499 = vmatpush1.msra.mxu0 0.0
        %500 = vmatprep.subr.mxu0 0.0
        %501 = vmatpush1.msra.mxu0 0.0
        %502 = vmatprep.subr.mxu0 0.0
        %503 = vmatpush1.msra.mxu0 0.0
        %504 = vmatprep.subr.mxu0 0.0
        %505 = vmatpush1.msra.mxu0 0.0
        %506 = vmatprep.subr.mxu0 0.0
        %507 = vmatpush1.msra.mxu0 0.0
        %508 = vmatprep.subr.mxu0 0.0
        %509 = vmatpush1.msra.mxu0 0.0
        %510 = vmatprep.subr.mxu0 0.0
        %511 = vmatpush1.msra.mxu0 0.0
        %512 = vmatprep.subr.mxu0 0.0
        %513 = vmatpush1.msra.mxu0 0.0
        %514 = vmatprep.subr.mxu0 0.0
        %515 = vmatpush1.msra.mxu0 0.0
        %516 = vmatprep.subr.mxu0 0.0
        %517 = vmatpush1.msra.mxu0 0.0
        %518 = vmatprep.subr.mxu0 0.0
        %519 = vmatpush1.msra.mxu0 0.0
        %520 = vmatprep.subr.mxu0 0.0
        %521 = vmatpush1.msra.mxu0 0.0
        %522 = vmatprep.subr.mxu0 0.0
        %523 = vmatpush1.msra.mxu0 0.0
        %524 = vmatprep.subr.mxu0 0.0
        %525 = vmatpush1.msra.mxu0 0.0
        %526 = vmatprep.subr.mxu0 0.0
        %527 = vmatpush1.msra.mxu0 0.0
        %528 = vmatprep.subr.mxu0 0.0
        %529 = vmatpush1.msra.mxu0 0.0
        %530 = vmatprep.subr.mxu0 0.0
        %531 = vmatpush1.msra.mxu0 0.0
        %532 = vmatprep.subr.mxu0 0.0
        %533 = vmatpush1.msra.mxu0 0.0
        %534 = vmatprep.mubr.f32.mxu0 0.0
        %v535 = vand.u32 %v249, 4294901760
        %v536 = vsub.f32 %v249, %v535
        %537 = vmatmul.mubr.f32.gmra.mrb[0].mxu0 %v536
        %v538 = vpop.f32.mrb[0].mxu0
        %v539 = vadd.f32 %v445, %v538
        %v540 = vpop.f32.mrb[0].mxu0
        %541 = vmatprep.mubr.f32.mxu0 0.0
        %v542 = vand.u32 %v252, 4294901760
        %v543 = vsub.f32 %v252, %v542
        %544 = vmatmul.mubr.f32.gmra.mrb[0].mxu0 %v543
        %v545 = vpop.f32.mrb[0].mxu0
        %v546 = vadd.f32 %v451, %v545
        %v547 = vpop.f32.mrb[0].mxu0
        %548 = vmatprep.mubr.f32.mxu0 0.0
        %v549 = vand.u32 %v255, 4294901760
        %v550 = vsub.f32 %v255, %v549
        %551 = vmatmul.mubr.f32.gmra.mrb[0].mxu0 %v550
        %v552 = vpop.f32.mrb[0].mxu0
        %v553 = vadd.f32 %v457, %v552
        %v554 = vpop.f32.mrb[0].mxu0
        %555 = vmatprep.mubr.f32.mxu0 0.0
        %v556 = vand.u32 %v258, 4294901760
        %v557 = vsub.f32 %v258, %v556
        %558 = vmatmul.mubr.f32.gmra.mrb[0].mxu0 %v557
        %v559 = vpop.f32.mrb[0].mxu0
        %v560 = vadd.f32 %v463, %v559
        %v561 = vpop.f32.mrb[0].mxu0
        %562 = vdwg.mxu0
        %563 = vmatprep.subr.mxu0 0.0
        %v564 = vand.u32 %v245, 4294901760
        %565 = vmatpush1.msra.mxu0 %v564
        %566 = vmatprep.subr.mxu0 0.0
        %v567 = vand.u32 %v246, 4294901760
        %568 = vmatpush1.msra.mxu0 %v567
        %569 = vmatprep.subr.mxu0 0.0
        %570 = vmatpush1.msra.mxu0 0.0
        %571 = vmatprep.subr.mxu0 0.0
        %572 = vmatpush1.msra.mxu0 0.0
        %573 = vmatprep.subr.mxu0 0.0
        %574 = vmatpush1.msra.mxu0 0.0
        %575 = vmatprep.subr.mxu0 0.0
        %576 = vmatpush1.msra.mxu0 0.0
        %577 = vmatprep.subr.mxu0 0.0
        %578 = vmatpush1.msra.mxu0 0.0
        %579 = vmatprep.subr.mxu0 0.0
        %580 = vmatpush1.msra.mxu0 0.0
        %581 = vmatprep.subr.mxu0 0.0
        %582 = vmatpush1.msra.mxu0 0.0
        %583 = vmatprep.subr.mxu0 0.0
        %584 = vmatpush1.msra.mxu0 0.0
        %585 = vmatprep.subr.mxu0 0.0
        %586 = vmatpush1.msra.mxu0 0.0
        %587 = vmatprep.subr.mxu0 0.0
        %588 = vmatpush1.msra.mxu0 0.0
        %589 = vmatprep.subr.mxu0 0.0
        %590 = vmatpush1.msra.mxu0 0.0
        %591 = vmatprep.subr.mxu0 0.0
        %592 = vmatpush1.msra.mxu0 0.0
        %593 = vmatprep.subr.mxu0 0.0
        %594 = vmatpush1.msra.mxu0 0.0
        %595 = vmatprep.subr.mxu0 0.0
        %596 = vmatpush1.msra.mxu0 0.0
        %597 = vmatprep.subr.mxu0 0.0
        %598 = vmatpush1.msra.mxu0 0.0
        %599 = vmatprep.subr.mxu0 0.0
        %600 = vmatpush1.msra.mxu0 0.0
        %601 = vmatprep.subr.mxu0 0.0
        %602 = vmatpush1.msra.mxu0 0.0
        %603 = vmatprep.subr.mxu0 0.0
        %604 = vmatpush1.msra.mxu0 0.0
        %605 = vmatprep.subr.mxu0 0.0
        %606 = vmatpush1.msra.mxu0 0.0
        %607 = vmatprep.subr.mxu0 0.0
        %608 = vmatpush1.msra.mxu0 0.0
        %609 = vmatprep.subr.mxu0 0.0
        %610 = vmatpush1.msra.mxu0 0.0
        %611 = vmatprep.subr.mxu0 0.0
        %612 = vmatpush1.msra.mxu0 0.0
        %613 = vmatprep.subr.mxu0 0.0
        %614 = vmatpush1.msra.mxu0 0.0
        %615 = vmatprep.subr.mxu0 0.0
        %616 = vmatpush1.msra.mxu0 0.0
        %617 = vmatprep.subr.mxu0 0.0
        %618 = vmatpush1.msra.mxu0 0.0
        %619 = vmatprep.subr.mxu0 0.0
        %620 = vmatpush1.msra.mxu0 0.0
        %621 = vmatprep.subr.mxu0 0.0
        %622 = vmatpush1.msra.mxu0 0.0
        %623 = vmatprep.subr.mxu0 0.0
        %624 = vmatpush1.msra.mxu0 0.0
        %625 = vmatprep.subr.mxu0 0.0
        %626 = vmatpush1.msra.mxu0 0.0
        %627 = vmatprep.subr.mxu0 0.0
        %628 = vmatpush1.msra.mxu0 0.0
        %629 = vmatprep.mubr.f32.mxu0 0.0
        %v630 = vand.u32 %v249, 4294901760
        %v631 = vsub.f32 %v249, %v630
        %v632 = vand.u32 %v631, 4294901760
        %633 = vmatmul.mubr.f32.gmra.mrb[0].mxu0 %v632
        %v634 = vpop.f32.mrb[0].mxu0
        %v635 = vadd.f32 %v539, %v634
        %v636 = vpop.f32.mrb[0].mxu0
        %637 = vmatprep.mubr.f32.mxu0 0.0
        %v638 = vand.u32 %v252, 4294901760
        %v639 = vsub.f32 %v252, %v638
        %v640 = vand.u32 %v639, 4294901760
        %641 = vmatmul.mubr.f32.gmra.mrb[0].mxu0 %v640
        %v642 = vpop.f32.mrb[0].mxu0
        %v643 = vadd.f32 %v546, %v642
        %v644 = vpop.f32.mrb[0].mxu0
        %645 = vmatprep.mubr.f32.mxu0 0.0
        %v646 = vand.u32 %v255, 4294901760
        %v647 = vsub.f32 %v255, %v646
        %v648 = vand.u32 %v647, 4294901760
        %649 = vmatmul.mubr.f32.gmra.mrb[0].mxu0 %v648
        %v650 = vpop.f32.mrb[0].mxu0
        %v651 = vadd.f32 %v553, %v650
        %v652 = vpop.f32.mrb[0].mxu0
        %653 = vmatprep.mubr.f32.mxu0 0.0
        %v654 = vand.u32 %v258, 4294901760
        %v655 = vsub.f32 %v258, %v654
        %v656 = vand.u32 %v655, 4294901760
        %657 = vmatmul.mubr.f32.gmra.mrb[0].mxu0 %v656
        %v658 = vpop.f32.mrb[0].mxu0
        %v659 = vadd.f32 %v560, %v658
        %v660 = vpop.f32.mrb[0].mxu0
        %661 = vdwg.mxu0
        %662 = vmatprep.subr.mxu0 0.0
        %v663 = vand.u32 %v245, 4294901760
        %v664 = vsub.f32 %v245, %v663
        %v665 = vand.u32 %v664, 4294901760
        %666 = vmatpush1.msra.mxu0 %v665
        %667 = vmatprep.subr.mxu0 0.0
        %v668 = vand.u32 %v246, 4294901760
        %v669 = vsub.f32 %v246, %v668
        %v670 = vand.u32 %v669, 4294901760
        %671 = vmatpush1.msra.mxu0 %v670
        %672 = vmatprep.subr.mxu0 0.0
        %673 = vmatpush1.msra.mxu0 0.0
        %674 = vmatprep.subr.mxu0 0.0
        %675 = vmatpush1.msra.mxu0 0.0
        %676 = vmatprep.subr.mxu0 0.0
        %677 = vmatpush1.msra.mxu0 0.0
        %678 = vmatprep.subr.mxu0 0.0
        %679 = vmatpush1.msra.mxu0 0.0
        %680 = vmatprep.subr.mxu0 0.0
        %681 = vmatpush1.msra.mxu0 0.0
        %682 = vmatprep.subr.mxu0 0.0
        %683 = vmatpush1.msra.mxu0 0.0
        %684 = vmatprep.subr.mxu0 0.0
        %685 = vmatpush1.msra.mxu0 0.0
        %686 = vmatprep.subr.mxu0 0.0
        %687 = vmatpush1.msra.mxu0 0.0
        %688 = vmatprep.subr.mxu0 0.0
        %689 = vmatpush1.msra.mxu0 0.0
        %690 = vmatprep.subr.mxu0 0.0
        %691 = vmatpush1.msra.mxu0 0.0
        %692 = vmatprep.subr.mxu0 0.0
        %693 = vmatpush1.msra.mxu0 0.0
        %694 = vmatprep.subr.mxu0 0.0
        %695 = vmatpush1.msra.mxu0 0.0
        %696 = vmatprep.subr.mxu0 0.0
        %697 = vmatpush1.msra.mxu0 0.0
        %698 = vmatprep.subr.mxu0 0.0
        %699 = vmatpush1.msra.mxu0 0.0
        %700 = vmatprep.subr.mxu0 0.0
        %701 = vmatpush1.msra.mxu0 0.0
        %702 = vmatprep.subr.mxu0 0.0
        %703 = vmatpush1.msra.mxu0 0.0
        %704 = vmatprep.subr.mxu0 0.0
        %705 = vmatpush1.msra.mxu0 0.0
        %706 = vmatprep.subr.mxu0 0.0
        %707 = vmatpush1.msra.mxu0 0.0
        %708 = vmatprep.subr.mxu0 0.0
        %709 = vmatpush1.msra.mxu0 0.0
        %710 = vmatprep.subr.mxu0 0.0
        %711 = vmatpush1.msra.mxu0 0.0
        %712 = vmatprep.subr.mxu0 0.0
        %713 = vmatpush1.msra.mxu0 0.0
        %714 = vmatprep.subr.mxu0 0.0
        %715 = vmatpush1.msra.mxu0 0.0
        %716 = vmatprep.subr.mxu0 0.0
        %717 = vmatpush1.msra.mxu0 0.0
        %718 = vmatprep.subr.mxu0 0.0
        %719 = vmatpush1.msra.mxu0 0.0
        %720 = vmatprep.subr.mxu0 0.0
        %721 = vmatpush1.msra.mxu0 0.0
        %722 = vmatprep.subr.mxu0 0.0
        %723 = vmatpush1.msra.mxu0 0.0
        %724 = vmatprep.subr.mxu0 0.0
        %725 = vmatpush1.msra.mxu0 0.0
        %726 = vmatprep.subr.mxu0 0.0
        %727 = vmatpush1.msra.mxu0 0.0
        %728 = vmatprep.subr.mxu0 0.0
        %729 = vmatpush1.msra.mxu0 0.0
        %730 = vmatprep.subr.mxu0 0.0
        %731 = vmatpush1.msra.mxu0 0.0
        %732 = vmatprep.mubr.f32.mxu0 0.0
        %v733 = vand.u32 %v249, 4294901760
        %734 = vmatmul.mubr.f32.gmra.mrb[0].mxu0 %v733
        %v735 = vpop.f32.mrb[0].mxu0
        %v736 = vadd.f32 %v635, %v735
        %v737 = vpop.f32.mrb[0].mxu0
        %738 = vmatprep.mubr.f32.mxu0 0.0
        %v739 = vand.u32 %v252, 4294901760
        %740 = vmatmul.mubr.f32.gmra.mrb[0].mxu0 %v739
        %v741 = vpop.f32.mrb[0].mxu0
        %v742 = vadd.f32 %v643, %v741
        %v743 = vpop.f32.mrb[0].mxu0
        %744 = vmatprep.mubr.f32.mxu0 0.0
        %v745 = vand.u32 %v255, 4294901760
        %746 = vmatmul.mubr.f32.gmra.mrb[0].mxu0 %v745
        %v747 = vpop.f32.mrb[0].mxu0
        %v748 = vadd.f32 %v651, %v747
        %v749 = vpop.f32.mrb[0].mxu0
        %750 = vmatprep.mubr.f32.mxu0 0.0
        %v751 = vand.u32 %v258, 4294901760
        %752 = vmatmul.mubr.f32.gmra.mrb[0].mxu0 %v751
        %v753 = vpop.f32.mrb[0].mxu0
        %v754 = vadd.f32 %v659, %v753
        %v755 = vpop.f32.mrb[0].mxu0
        %756 = vdwg.mxu0
        %757 = vmatprep.subr.mxu0 0.0
        %v758 = vand.u32 %v245, 4294901760
        %759 = vmatpush1.msra.mxu0 %v758
        %760 = vmatprep.subr.mxu0 0.0
        %v761 = vand.u32 %v246, 4294901760
        %762 = vmatpush1.msra.mxu0 %v761
        %763 = vmatprep.subr.mxu0 0.0
        %764 = vmatpush1.msra.mxu0 0.0
        %765 = vmatprep.subr.mxu0 0.0
        %766 = vmatpush1.msra.mxu0 0.0
        %767 = vmatprep.subr.mxu0 0.0
        %768 = vmatpush1.msra.mxu0 0.0
        %769 = vmatprep.subr.mxu0 0.0
        %770 = vmatpush1.msra.mxu0 0.0
        %771 = vmatprep.subr.mxu0 0.0
        %772 = vmatpush1.msra.mxu0 0.0
        %773 = vmatprep.subr.mxu0 0.0
        %774 = vmatpush1.msra.mxu0 0.0
        %775 = vmatprep.subr.mxu0 0.0
        %776 = vmatpush1.msra.mxu0 0.0
        %777 = vmatprep.subr.mxu0 0.0
        %778 = vmatpush1.msra.mxu0 0.0
        %779 = vmatprep.subr.mxu0 0.0
        %780 = vmatpush1.msra.mxu0 0.0
        %781 = vmatprep.subr.mxu0 0.0
        %782 = vmatpush1.msra.mxu0 0.0
        %783 = vmatprep.subr.mxu0 0.0
        %784 = vmatpush1.msra.mxu0 0.0
        %785 = vmatprep.subr.mxu0 0.0
        %786 = vmatpush1.msra.mxu0 0.0
        %787 = vmatprep.subr.mxu0 0.0
        %788 = vmatpush1.msra.mxu0 0.0
        %789 = vmatprep.subr.mxu0 0.0
        %790 = vmatpush1.msra.mxu0 0.0
        %791 = vmatprep.subr.mxu0 0.0
        %792 = vmatpush1.msra.mxu0 0.0
        %793 = vmatprep.subr.mxu0 0.0
        %794 = vmatpush1.msra.mxu0 0.0
        %795 = vmatprep.subr.mxu0 0.0
        %796 = vmatpush1.msra.mxu0 0.0
        %797 = vmatprep.subr.mxu0 0.0
        %798 = vmatpush1.msra.mxu0 0.0
        %799 = vmatprep.subr.mxu0 0.0
        %800 = vmatpush1.msra.mxu0 0.0
        %801 = vmatprep.subr.mxu0 0.0
        %802 = vmatpush1.msra.mxu0 0.0
        %803 = vmatprep.subr.mxu0 0.0
        %804 = vmatpush1.msra.mxu0 0.0
        %805 = vmatprep.subr.mxu0 0.0
        %806 = vmatpush1.msra.mxu0 0.0
        %807 = vmatprep.subr.mxu0 0.0
        %808 = vmatpush1.msra.mxu0 0.0
        %809 = vmatprep.subr.mxu0 0.0
        %810 = vmatpush1.msra.mxu0 0.0
        %811 = vmatprep.subr.mxu0 0.0
        %812 = vmatpush1.msra.mxu0 0.0
        %813 = vmatprep.subr.mxu0 0.0
        %814 = vmatpush1.msra.mxu0 0.0
        %815 = vmatprep.subr.mxu0 0.0
        %816 = vmatpush1.msra.mxu0 0.0
        %817 = vmatprep.subr.mxu0 0.0
        %818 = vmatpush1.msra.mxu0 0.0
        %819 = vmatprep.subr.mxu0 0.0
        %820 = vmatpush1.msra.mxu0 0.0
        %821 = vmatprep.subr.mxu0 0.0
        %822 = vmatpush1.msra.mxu0 0.0
        %823 = vmatprep.mubr.f32.mxu0 0.0
        %v824 = vand.u32 %v249, 4294901760
        %825 = vmatmul.mubr.f32.gmra.mrb[0].mxu0 %v824
        %v826 = vpop.f32.mrb[0].mxu0
        %v827 = vadd.f32 %v736, %v826
        %v828 = vpop.f32.mrb[0].mxu0
        %829 = vmatprep.mubr.f32.mxu0 0.0
        %v830 = vand.u32 %v252, 4294901760
        %831 = vmatmul.mubr.f32.gmra.mrb[0].mxu0 %v830
        %v832 = vpop.f32.mrb[0].mxu0
        %v833 = vadd.f32 %v742, %v832
        %v834 = vpop.f32.mrb[0].mxu0
        %835 = vmatprep.mubr.f32.mxu0 0.0
        %v836 = vand.u32 %v255, 4294901760
        %837 = vmatmul.mubr.f32.gmra.mrb[0].mxu0 %v836
        %v838 = vpop.f32.mrb[0].mxu0
        %v839 = vadd.f32 %v748, %v838
        %v840 = vpop.f32.mrb[0].mxu0
        %841 = vmatprep.mubr.f32.mxu0 0.0
        %v842 = vand.u32 %v258, 4294901760
        %843 = vmatmul.mubr.f32.gmra.mrb[0].mxu0 %v842
        %v844 = vpop.f32.mrb[0].mxu0
        %v845 = vadd.f32 %v754, %v844
        %v846 = vpop.f32.mrb[0].mxu0
        %847 = vdwg.mxu0
        %v848 = vld [vmem:[%s2] sm:$0x1]
        %v850 = vlaneseq
        %v851 = vshrl.u32 %v850, 7
        %v852 = vsub.s32 0, %v851
        %v853 = vrot.slane %v848, %v852
        %v855 = vadd.f32 %v827, %v853
        %v856 = vadd.f32 %v833, %v853
        %v857 = vadd.f32 %v839, %v853
        %v858 = vadd.f32 %v845, %v853
        %859 = vst.msk [vmem:[#allocation3] sm:$0xff] %vm247, %v855
        %860 = vst.msk [vmem:[#allocation3 + $0x8] sm:$0xff] %vm247, %v856
        %861 = vst.msk [vmem:[#allocation3 + $0x10] sm:$0xff] %vm247, %v857
        %862 = vst.msk [vmem:[#allocation3 + $0x18] sm:$0xff] %vm247, %v858
        %867 = vrot.lane.b32.xlu0 %v827, 112
        %v868 = vpop.permute.xlu0 %867
        %869 = vrot.lane.b32.xlu0 %v833, 112
        %v870 = vpop.permute.xlu0 %869
        %871 = vrot.lane.b32.xlu0 %v839, 112
        %v872 = vpop.permute.xlu0 %871
        %873 = vrot.lane.b32.xlu0 %v845, 112
        %v874 = vpop.permute.xlu0 %873
        %vm879 = vcmask 31744
        %880 = vst.msk [vmem:[#allocation2] sm:$0xff] %vm879, %v868
        %881 = vst.msk [vmem:[#allocation2 + $0x8] sm:$0xff] %vm879, %v870
        %882 = vst.msk [vmem:[#allocation2 + $0x10] sm:$0xff] %vm879, %v872
        %883 = vst.msk [vmem:[#allocation2 + $0x18] sm:$0xff] %vm879, %v874
        %884 = vst.msk [vmem:[#allocation4] sm:$0xff] %vm247, 0.0
        %885 = vst.msk [vmem:[#allocation4 + $0x8] sm:$0xff] %vm247, 0.0
        %886 = vst.msk [vmem:[#allocation4 + $0x10] sm:$0xff] %vm247, 0.0
        %887 = vst.msk [vmem:[#allocation4 + $0x18] sm:$0xff] %vm247, 0.0
        %vm888 = vcmask 7168
        %889 = vst.msk [vmem:[#allocation5] sm:$0xff] %vm888, 0.0
        %890 = vst.msk [vmem:[#allocation5 + $0x8] sm:$0xff] %vm888, 0.0
        %891 = vst.msk [vmem:[#allocation5 + $0x10] sm:$0xff] %vm888, 0.0
        %892 = vst.msk [vmem:[#allocation5 + $0x18] sm:$0xff] %vm888, 0.0
      $region44: #{tpu_custom_call.1} parent=39 // pred_fallthru
        _
      %s893 = smul.u32 %s21, 16
      %s894 = scalar_lea.vmem [#allocation2], %s893
      %v895 = vld [vmem:[%s894] sm:$0xff]
      %v896 = vld [vmem:[%s894 + $0x8] sm:$0xff]
      %s897 = scalar_lea.vmem [#allocation3], %s893
      %v898 = vld [vmem:[%s897] sm:$0xff]
      %v899 = vld [vmem:[%s897 + $0x8] sm:$0xff]
      %v900 = vld [vmem:[#allocation2] sm:$0xff]
      %v901 = vld [vmem:[#allocation2 + $0x8] sm:$0xff]
      %v902 = vld [vmem:[#allocation2 + $0x10] sm:$0xff]
      %v903 = vld [vmem:[#allocation2 + $0x18] sm:$0xff]
      %vm904 = vcmask 31744
      %v906 = vsel %vm904, %v900, 0
      %v909 = vsel %vm904, %v901, 0
      %v912 = vsel %vm904, %v902, 0
      %v915 = vsel %vm904, %v903, 0
      %v918 = vsel %vm904, %v895, 0
      %v921 = vsel %vm904, %v896, 0
      %923 = vmatprep.subr.mxu0 0.0
      %v924 = vand.u32 %v918, 4294901760
      %925 = vmatpush1.xpose.msra.mxu0 %v924
      %926 = vmatprep.subr.mxu0 0.0
      %v927 = vand.u32 %v921, 4294901760
      %928 = vmatpush1.xpose.msra.mxu0 %v927
      %929 = vmatprep.subr.mxu0 0.0
      %930 = vmatpush1.xpose.msra.mxu0 0.0
      %931 = vmatprep.subr.mxu0 0.0
      %932 = vmatpush1.xpose.msra.mxu0 0.0
      %933 = vmatprep.subr.mxu0 0.0
      %934 = vmatpush1.xpose.msra.mxu0 0.0
      %935 = vmatprep.subr.mxu0 0.0
      %936 = vmatpush1.xpose.msra.mxu0 0.0
      %937 = vmatprep.subr.mxu0 0.0
      %938 = vmatpush1.xpose.msra.mxu0 0.0
      %939 = vmatprep.subr.mxu0 0.0
      %940 = vmatpush1.xpose.msra.mxu0 0.0
      %941 = vmatprep.subr.mxu0 0.0
      %942 = vmatpush1.xpose.msra.mxu0 0.0
      %943 = vmatprep.subr.mxu0 0.0
      %944 = vmatpush1.xpose.msra.mxu0 0.0
      %945 = vmatprep.subr.mxu0 0.0
      %946 = vmatpush1.xpose.msra.mxu0 0.0
      %947 = vmatprep.subr.mxu0 0.0
      %948 = vmatpush1.xpose.msra.mxu0 0.0
      %949 = vmatprep.subr.mxu0 0.0
      %950 = vmatpush1.xpose.msra.mxu0 0.0
      %951 = vmatprep.subr.mxu0 0.0
      %952 = vmatpush1.xpose.msra.mxu0 0.0
      %953 = vmatprep.subr.mxu0 0.0
      %954 = vmatpush1.xpose.msra.mxu0 0.0
      %955 = vmatprep.subr.mxu0 0.0
      %956 = vmatpush1.xpose.msra.mxu0 0.0
      %957 = vmatprep.subr.mxu0 0.0
      %958 = vmatpush1.xpose.msra.mxu0 0.0
      %959 = vmatprep.subr.mxu0 0.0
      %960 = vmatpush1.xpose.msra.mxu0 0.0
      %961 = vmatprep.subr.mxu0 0.0
      %962 = vmatpush1.xpose.msra.mxu0 0.0
      %963 = vmatprep.subr.mxu0 0.0
      %964 = vmatpush1.xpose.msra.mxu0 0.0
      %965 = vmatprep.subr.mxu0 0.0
      %966 = vmatpush1.xpose.msra.mxu0 0.0
      %967 = vmatprep.subr.mxu0 0.0
      %968 = vmatpush1.xpose.msra.mxu0 0.0
      %969 = vmatprep.subr.mxu0 0.0
      %970 = vmatpush1.xpose.msra.mxu0 0.0
      %971 = vmatprep.subr.mxu0 0.0
      %972 = vmatpush1.xpose.msra.mxu0 0.0
      %973 = vmatprep.subr.mxu0 0.0
      %974 = vmatpush1.xpose.msra.mxu0 0.0
      %975 = vmatprep.subr.mxu0 0.0
      %976 = vmatpush1.xpose.msra.mxu0 0.0
      %977 = vmatprep.subr.mxu0 0.0
      %978 = vmatpush1.xpose.msra.mxu0 0.0
      %979 = vmatprep.subr.mxu0 0.0
      %980 = vmatpush1.xpose.msra.mxu0 0.0
      %981 = vmatprep.subr.mxu0 0.0
      %982 = vmatpush1.xpose.msra.mxu0 0.0
      %983 = vmatprep.subr.mxu0 0.0
      %984 = vmatpush1.xpose.msra.mxu0 0.0
      %985 = vmatprep.subr.mxu0 0.0
      %986 = vmatpush1.xpose.msra.mxu0 0.0
      %987 = vmatprep.subr.mxu0 0.0
      %988 = vmatpush1.xpose.msra.mxu0 0.0
      %989 = vmatprep.mubr.f32.mxu0 0.0
      %v990 = vand.u32 %v906, 4294901760
      %v991 = vsub.f32 %v906, %v990
      %v992 = vand.u32 %v991, 4294901760
      %v993 = vsub.f32 %v991, %v992
      %v994 = vand.u32 %v993, 4294901760
      %995 = vmatmul.mubr.f32.gmra.mrb[0].mxu0 %v994
      %v996 = vpop.f32.mrb[0].mxu0
      %v997 = vadd.f32 0.0, %v996
      %v998 = vpop.f32.mrb[0].mxu0
      %999 = vmatprep.mubr.f32.mxu0 0.0
      %v1000 = vand.u32 %v909, 4294901760
      %v1001 = vsub.f32 %v909, %v1000
      %v1002 = vand.u32 %v1001, 4294901760
      %v1003 = vsub.f32 %v1001, %v1002
      %v1004 = vand.u32 %v1003, 4294901760
      %1005 = vmatmul.mubr.f32.gmra.mrb[0].mxu0 %v1004
      %v1006 = vpop.f32.mrb[0].mxu0
      %v1007 = vadd.f32 0.0, %v1006
      %v1008 = vpop.f32.mrb[0].mxu0
      %1009 = vmatprep.mubr.f32.mxu0 0.0
      %v1010 = vand.u32 %v912, 4294901760
      %v1011 = vsub.f32 %v912, %v1010
      %v1012 = vand.u32 %v1011, 4294901760
      %v1013 = vsub.f32 %v1011, %v1012
      %v1014 = vand.u32 %v1013, 4294901760
      %1015 = vmatmul.mubr.f32.gmra.mrb[0].mxu0 %v1014
      %v1016 = vpop.f32.mrb[0].mxu0
      %v1017 = vadd.f32 0.0, %v1016
      %v1018 = vpop.f32.mrb[0].mxu0
      %1019 = vmatprep.mubr.f32.mxu0 0.0
      %v1020 = vand.u32 %v915, 4294901760
      %v1021 = vsub.f32 %v915, %v1020
      %v1022 = vand.u32 %v1021, 4294901760
      %v1023 = vsub.f32 %v1021, %v1022
      %v1024 = vand.u32 %v1023, 4294901760
      %1025 = vmatmul.mubr.f32.gmra.mrb[0].mxu0 %v1024
      %v1026 = vpop.f32.mrb[0].mxu0
      %v1027 = vadd.f32 0.0, %v1026
      %v1028 = vpop.f32.mrb[0].mxu0
      %1029 = vdwg.mxu0
      %1030 = vmatprep.subr.mxu0 0.0
      %v1031 = vand.u32 %v918, 4294901760
      %v1032 = vsub.f32 %v918, %v1031
      %v1033 = vand.u32 %v1032, 4294901760
      %v1034 = vsub.f32 %v1032, %v1033
      %v1035 = vand.u32 %v1034, 4294901760
      %1036 = vmatpush1.xpose.msra.mxu0 %v1035
      %1037 = vmatprep.subr.mxu0 0.0
      %v1038 = vand.u32 %v921, 4294901760
      %v1039 = vsub.f32 %v921, %v1038
      %v1040 = vand.u32 %v1039, 4294901760
      %v1041 = vsub.f32 %v1039, %v1040
      %v1042 = vand.u32 %v1041, 4294901760
      %1043 = vmatpush1.xpose.msra.mxu0 %v1042
      %1044 = vmatprep.subr.mxu0 0.0
      %1045 = vmatpush1.xpose.msra.mxu0 0.0
      %1046 = vmatprep.subr.mxu0 0.0
      %1047 = vmatpush1.xpose.msra.mxu0 0.0
      %1048 = vmatprep.subr.mxu0 0.0
      %1049 = vmatpush1.xpose.msra.mxu0 0.0
      %1050 = vmatprep.subr.mxu0 0.0
      %1051 = vmatpush1.xpose.msra.mxu0 0.0
      %1052 = vmatprep.subr.mxu0 0.0
      %1053 = vmatpush1.xpose.msra.mxu0 0.0
      %1054 = vmatprep.subr.mxu0 0.0
      %1055 = vmatpush1.xpose.msra.mxu0 0.0
      %1056 = vmatprep.subr.mxu0 0.0
      %1057 = vmatpush1.xpose.msra.mxu0 0.0
      %1058 = vmatprep.subr.mxu0 0.0
      %1059 = vmatpush1.xpose.msra.mxu0 0.0
      %1060 = vmatprep.subr.mxu0 0.0
      %1061 = vmatpush1.xpose.msra.mxu0 0.0
      %1062 = vmatprep.subr.mxu0 0.0
      %1063 = vmatpush1.xpose.msra.mxu0 0.0
      %1064 = vmatprep.subr.mxu0 0.0
      %1065 = vmatpush1.xpose.msra.mxu0 0.0
      %1066 = vmatprep.subr.mxu0 0.0
      %1067 = vmatpush1.xpose.msra.mxu0 0.0
      %1068 = vmatprep.subr.mxu0 0.0
      %1069 = vmatpush1.xpose.msra.mxu0 0.0
      %1070 = vmatprep.subr.mxu0 0.0
      %1071 = vmatpush1.xpose.msra.mxu0 0.0
      %1072 = vmatprep.subr.mxu0 0.0
      %1073 = vmatpush1.xpose.msra.mxu0 0.0
      %1074 = vmatprep.subr.mxu0 0.0
      %1075 = vmatpush1.xpose.msra.mxu0 0.0
      %1076 = vmatprep.subr.mxu0 0.0
      %1077 = vmatpush1.xpose.msra.mxu0 0.0
      %1078 = vmatprep.subr.mxu0 0.0
      %1079 = vmatpush1.xpose.msra.mxu0 0.0
      %1080 = vmatprep.subr.mxu0 0.0
      %1081 = vmatpush1.xpose.msra.mxu0 0.0
      %1082 = vmatprep.subr.mxu0 0.0
      %1083 = vmatpush1.xpose.msra.mxu0 0.0
      %1084 = vmatprep.subr.mxu0 0.0
      %1085 = vmatpush1.xpose.msra.mxu0 0.0
      %1086 = vmatprep.subr.mxu0 0.0
      %1087 = vmatpush1.xpose.msra.mxu0 0.0
      %1088 = vmatprep.subr.mxu0 0.0
      %1089 = vmatpush1.xpose.msra.mxu0 0.0
      %1090 = vmatprep.subr.mxu0 0.0
      %1091 = vmatpush1.xpose.msra.mxu0 0.0
      %1092 = vmatprep.subr.mxu0 0.0
      %1093 = vmatpush1.xpose.msra.mxu0 0.0
      %1094 = vmatprep.subr.mxu0 0.0
      %1095 = vmatpush1.xpose.msra.mxu0 0.0
      %1096 = vmatprep.subr.mxu0 0.0
      %1097 = vmatpush1.xpose.msra.mxu0 0.0
      %1098 = vmatprep.subr.mxu0 0.0
      %1099 = vmatpush1.xpose.msra.mxu0 0.0
      %1100 = vmatprep.subr.mxu0 0.0
      %1101 = vmatpush1.xpose.msra.mxu0 0.0
      %1102 = vmatprep.subr.mxu0 0.0
      %1103 = vmatpush1.xpose.msra.mxu0 0.0
      %1104 = vmatprep.mubr.f32.mxu0 0.0
      %v1105 = vand.u32 %v906, 4294901760
      %1106 = vmatmul.mubr.f32.gmra.mrb[0].mxu0 %v1105
      %v1107 = vpop.f32.mrb[0].mxu0
      %v1108 = vadd.f32 %v997, %v1107
      %v1109 = vpop.f32.mrb[0].mxu0
      %1110 = vmatprep.mubr.f32.mxu0 0.0
      %v1111 = vand.u32 %v909, 4294901760
      %1112 = vmatmul.mubr.f32.gmra.mrb[0].mxu0 %v1111
      %v1113 = vpop.f32.mrb[0].mxu0
      %v1114 = vadd.f32 %v1007, %v1113
      %v1115 = vpop.f32.mrb[0].mxu0
      %1116 = vmatprep.mubr.f32.mxu0 0.0
      %v1117 = vand.u32 %v912, 4294901760
      %1118 = vmatmul.mubr.f32.gmra.mrb[0].mxu0 %v1117
      %v1119 = vpop.f32.mrb[0].mxu0
      %v1120 = vadd.f32 %v1017, %v1119
      %v1121 = vpop.f32.mrb[0].mxu0
      %1122 = vmatprep.mubr.f32.mxu0 0.0
      %v1123 = vand.u32 %v915, 4294901760
      %1124 = vmatmul.mubr.f32.gmra.mrb[0].mxu0 %v1123
      %v1125 = vpop.f32.mrb[0].mxu0
      %v1126 = vadd.f32 %v1027, %v1125
      %v1127 = vpop.f32.mrb[0].mxu0
      %1128 = vdwg.mxu0
      %1129 = vmatprep.subr.mxu0 0.0
      %v1130 = vand.u32 %v918, 4294901760
      %v1131 = vsub.f32 %v918, %v1130
      %1132 = vmatpush1.xpose.msra.mxu0 %v1131
      %1133 = vmatprep.subr.mxu0 0.0
      %v1134 = vand.u32 %v921, 4294901760
      %v1135 = vsub.f32 %v921, %v1134
      %1136 = vmatpush1.xpose.msra.mxu0 %v1135
      %1137 = vmatprep.subr.mxu0 0.0
      %1138 = vmatpush1.xpose.msra.mxu0 0.0
      %1139 = vmatprep.subr.mxu0 0.0
      %1140 = vmatpush1.xpose.msra.mxu0 0.0
      %1141 = vmatprep.subr.mxu0 0.0
      %1142 = vmatpush1.xpose.msra.mxu0 0.0
      %1143 = vmatprep.subr.mxu0 0.0
      %1144 = vmatpush1.xpose.msra.mxu0 0.0
      %1145 = vmatprep.subr.mxu0 0.0
      %1146 = vmatpush1.xpose.msra.mxu0 0.0
      %1147 = vmatprep.subr.mxu0 0.0
      %1148 = vmatpush1.xpose.msra.mxu0 0.0
      %1149 = vmatprep.subr.mxu0 0.0
      %1150 = vmatpush1.xpose.msra.mxu0 0.0
      %1151 = vmatprep.subr.mxu0 0.0
      %1152 = vmatpush1.xpose.msra.mxu0 0.0
      %1153 = vmatprep.subr.mxu0 0.0
      %1154 = vmatpush1.xpose.msra.mxu0 0.0
      %1155 = vmatprep.subr.mxu0 0.0
      %1156 = vmatpush1.xpose.msra.mxu0 0.0
      %1157 = vmatprep.subr.mxu0 0.0
      %1158 = vmatpush1.xpose.msra.mxu0 0.0
      %1159 = vmatprep.subr.mxu0 0.0
      %1160 = vmatpush1.xpose.msra.mxu0 0.0
      %1161 = vmatprep.subr.mxu0 0.0
      %1162 = vmatpush1.xpose.msra.mxu0 0.0
      %1163 = vmatprep.subr.mxu0 0.0
      %1164 = vmatpush1.xpose.msra.mxu0 0.0
      %1165 = vmatprep.subr.mxu0 0.0
      %1166 = vmatpush1.xpose.msra.mxu0 0.0
      %1167 = vmatprep.subr.mxu0 0.0
      %1168 = vmatpush1.xpose.msra.mxu0 0.0
      %1169 = vmatprep.subr.mxu0 0.0
      %1170 = vmatpush1.xpose.msra.mxu0 0.0
      %1171 = vmatprep.subr.mxu0 0.0
      %1172 = vmatpush1.xpose.msra.mxu0 0.0
      %1173 = vmatprep.subr.mxu0 0.0
      %1174 = vmatpush1.xpose.msra.mxu0 0.0
      %1175 = vmatprep.subr.mxu0 0.0
      %1176 = vmatpush1.xpose.msra.mxu0 0.0
      %1177 = vmatprep.subr.mxu0 0.0
      %1178 = vmatpush1.xpose.msra.mxu0 0.0
      %1179 = vmatprep.subr.mxu0 0.0
      %1180 = vmatpush1.xpose.msra.mxu0 0.0
      %1181 = vmatprep.subr.mxu0 0.0
      %1182 = vmatpush1.xpose.msra.mxu0 0.0
      %1183 = vmatprep.subr.mxu0 0.0
      %1184 = vmatpush1.xpose.msra.mxu0 0.0
      %1185 = vmatprep.subr.mxu0 0.0
      %1186 = vmatpush1.xpose.msra.mxu0 0.0
      %1187 = vmatprep.subr.mxu0 0.0
      %1188 = vmatpush1.xpose.msra.mxu0 0.0
      %1189 = vmatprep.subr.mxu0 0.0
      %1190 = vmatpush1.xpose.msra.mxu0 0.0
      %1191 = vmatprep.subr.mxu0 0.0
      %1192 = vmatpush1.xpose.msra.mxu0 0.0
      %1193 = vmatprep.subr.mxu0 0.0
      %1194 = vmatpush1.xpose.msra.mxu0 0.0
      %1195 = vmatprep.subr.mxu0 0.0
      %1196 = vmatpush1.xpose.msra.mxu0 0.0
      %1197 = vmatprep.mubr.f32.mxu0 0.0
      %v1198 = vand.u32 %v906, 4294901760
      %v1199 = vsub.f32 %v906, %v1198
      %1200 = vmatmul.mubr.f32.gmra.mrb[0].mxu0 %v1199
      %v1201 = vpop.f32.mrb[0].mxu0
      %v1202 = vadd.f32 %v1108, %v1201
      %v1203 = vpop.f32.mrb[0].mxu0
      %1204 = vmatprep.mubr.f32.mxu0 0.0
      %v1205 = vand.u32 %v909, 4294901760
      %v1206 = vsub.f32 %v909, %v1205
      %1207 = vmatmul.mubr.f32.gmra.mrb[0].mxu0 %v1206
      %v1208 = vpop.f32.mrb[0].mxu0
      %v1209 = vadd.f32 %v1114, %v1208
      %v1210 = vpop.f32.mrb[0].mxu0
      %1211 = vmatprep.mubr.f32.mxu0 0.0
      %v1212 = vand.u32 %v912, 4294901760
      %v1213 = vsub.f32 %v912, %v1212
      %1214 = vmatmul.mubr.f32.gmra.mrb[0].mxu0 %v1213
      %v1215 = vpop.f32.mrb[0].mxu0
      %v1216 = vadd.f32 %v1120, %v1215
      %v1217 = vpop.f32.mrb[0].mxu0
      %1218 = vmatprep.mubr.f32.mxu0 0.0
      %v1219 = vand.u32 %v915, 4294901760
      %v1220 = vsub.f32 %v915, %v1219
      %1221 = vmatmul.mubr.f32.gmra.mrb[0].mxu0 %v1220
      %v1222 = vpop.f32.mrb[0].mxu0
      %v1223 = vadd.f32 %v1126, %v1222
      %v1224 = vpop.f32.mrb[0].mxu0
      %1225 = vdwg.mxu0
      %1226 = vmatprep.subr.mxu0 0.0
      %v1227 = vand.u32 %v918, 4294901760
      %1228 = vmatpush1.xpose.msra.mxu0 %v1227
      %1229 = vmatprep.subr.mxu0 0.0
      %v1230 = vand.u32 %v921, 4294901760
      %1231 = vmatpush1.xpose.msra.mxu0 %v1230
      %1232 = vmatprep.subr.mxu0 0.0
      %1233 = vmatpush1.xpose.msra.mxu0 0.0
      %1234 = vmatprep.subr.mxu0 0.0
      %1235 = vmatpush1.xpose.msra.mxu0 0.0
      %1236 = vmatprep.subr.mxu0 0.0
      %1237 = vmatpush1.xpose.msra.mxu0 0.0
      %1238 = vmatprep.subr.mxu0 0.0
      %1239 = vmatpush1.xpose.msra.mxu0 0.0
      %1240 = vmatprep.subr.mxu0 0.0
      %1241 = vmatpush1.xpose.msra.mxu0 0.0
      %1242 = vmatprep.subr.mxu0 0.0
      %1243 = vmatpush1.xpose.msra.mxu0 0.0
      %1244 = vmatprep.subr.mxu0 0.0
      %1245 = vmatpush1.xpose.msra.mxu0 0.0
      %1246 = vmatprep.subr.mxu0 0.0
      %1247 = vmatpush1.xpose.msra.mxu0 0.0
      %1248 = vmatprep.subr.mxu0 0.0
      %1249 = vmatpush1.xpose.msra.mxu0 0.0
      %1250 = vmatprep.subr.mxu0 0.0
      %1251 = vmatpush1.xpose.msra.mxu0 0.0
      %1252 = vmatprep.subr.mxu0 0.0
      %1253 = vmatpush1.xpose.msra.mxu0 0.0
      %1254 = vmatprep.subr.mxu0 0.0
      %1255 = vmatpush1.xpose.msra.mxu0 0.0
      %1256 = vmatprep.subr.mxu0 0.0
      %1257 = vmatpush1.xpose.msra.mxu0 0.0
      %1258 = vmatprep.subr.mxu0 0.0
      %1259 = vmatpush1.xpose.msra.mxu0 0.0
      %1260 = vmatprep.subr.mxu0 0.0
      %1261 = vmatpush1.xpose.msra.mxu0 0.0
      %1262 = vmatprep.subr.mxu0 0.0
      %1263 = vmatpush1.xpose.msra.mxu0 0.0
      %1264 = vmatprep.subr.mxu0 0.0
      %1265 = vmatpush1.xpose.msra.mxu0 0.0
      %1266 = vmatprep.subr.mxu0 0.0
      %1267 = vmatpush1.xpose.msra.mxu0 0.0
      %1268 = vmatprep.subr.mxu0 0.0
      %1269 = vmatpush1.xpose.msra.mxu0 0.0
      %1270 = vmatprep.subr.mxu0 0.0
      %1271 = vmatpush1.xpose.msra.mxu0 0.0
      %1272 = vmatprep.subr.mxu0 0.0
      %1273 = vmatpush1.xpose.msra.mxu0 0.0
      %1274 = vmatprep.subr.mxu0 0.0
      %1275 = vmatpush1.xpose.msra.mxu0 0.0
      %1276 = vmatprep.subr.mxu0 0.0
      %1277 = vmatpush1.xpose.msra.mxu0 0.0
      %1278 = vmatprep.subr.mxu0 0.0
      %1279 = vmatpush1.xpose.msra.mxu0 0.0
      %1280 = vmatprep.subr.mxu0 0.0
      %1281 = vmatpush1.xpose.msra.mxu0 0.0
      %1282 = vmatprep.subr.mxu0 0.0
      %1283 = vmatpush1.xpose.msra.mxu0 0.0
      %1284 = vmatprep.subr.mxu0 0.0
      %1285 = vmatpush1.xpose.msra.mxu0 0.0
      %1286 = vmatprep.subr.mxu0 0.0
      %1287 = vmatpush1.xpose.msra.mxu0 0.0
      %1288 = vmatprep.subr.mxu0 0.0
      %1289 = vmatpush1.xpose.msra.mxu0 0.0
      %1290 = vmatprep.subr.mxu0 0.0
      %1291 = vmatpush1.xpose.msra.mxu0 0.0
      %1292 = vmatprep.mubr.f32.mxu0 0.0
      %v1293 = vand.u32 %v906, 4294901760
      %v1294 = vsub.f32 %v906, %v1293
      %v1295 = vand.u32 %v1294, 4294901760
      %1296 = vmatmul.mubr.f32.gmra.mrb[0].mxu0 %v1295
      %v1297 = vpop.f32.mrb[0].mxu0
      %v1298 = vadd.f32 %v1202, %v1297
      %v1299 = vpop.f32.mrb[0].mxu0
      %1300 = vmatprep.mubr.f32.mxu0 0.0
      %v1301 = vand.u32 %v909, 4294901760
      %v1302 = vsub.f32 %v909, %v1301
      %v1303 = vand.u32 %v1302, 4294901760
      %1304 = vmatmul.mubr.f32.gmra.mrb[0].mxu0 %v1303
      %v1305 = vpop.f32.mrb[0].mxu0
      %v1306 = vadd.f32 %v1209, %v1305
      %v1307 = vpop.f32.mrb[0].mxu0
      %1308 = vmatprep.mubr.f32.mxu0 0.0
      %v1309 = vand.u32 %v912, 4294901760
      %v1310 = vsub.f32 %v912, %v1309
      %v1311 = vand.u32 %v1310, 4294901760
      %1312 = vmatmul.mubr.f32.gmra.mrb[0].mxu0 %v1311
      %v1313 = vpop.f32.mrb[0].mxu0
      %v1314 = vadd.f32 %v1216, %v1313
      %v1315 = vpop.f32.mrb[0].mxu0
      %1316 = vmatprep.mubr.f32.mxu0 0.0
      %v1317 = vand.u32 %v915, 4294901760
      %v1318 = vsub.f32 %v915, %v1317
      %v1319 = vand.u32 %v1318, 4294901760
      %1320 = vmatmul.mubr.f32.gmra.mrb[0].mxu0 %v1319
      %v1321 = vpop.f32.mrb[0].mxu0
      %v1322 = vadd.f32 %v1223, %v1321
      %v1323 = vpop.f32.mrb[0].mxu0
      %1324 = vdwg.mxu0
      %1325 = vmatprep.subr.mxu0 0.0
      %v1326 = vand.u32 %v918, 4294901760
      %v1327 = vsub.f32 %v918, %v1326
      %v1328 = vand.u32 %v1327, 4294901760
      %1329 = vmatpush1.xpose.msra.mxu0 %v1328
      %1330 = vmatprep.subr.mxu0 0.0
      %v1331 = vand.u32 %v921, 4294901760
      %v1332 = vsub.f32 %v921, %v1331
      %v1333 = vand.u32 %v1332, 4294901760
      %1334 = vmatpush1.xpose.msra.mxu0 %v1333
      %1335 = vmatprep.subr.mxu0 0.0
      %1336 = vmatpush1.xpose.msra.mxu0 0.0
      %1337 = vmatprep.subr.mxu0 0.0
      %1338 = vmatpush1.xpose.msra.mxu0 0.0
      %1339 = vmatprep.subr.mxu0 0.0
      %1340 = vmatpush1.xpose.msra.mxu0 0.0
      %1341 = vmatprep.subr.mxu0 0.0
      %1342 = vmatpush1.xpose.msra.mxu0 0.0
      %1343 = vmatprep.subr.mxu0 0.0
      %1344 = vmatpush1.xpose.msra.mxu0 0.0
      %1345 = vmatprep.subr.mxu0 0.0
      %1346 = vmatpush1.xpose.msra.mxu0 0.0
      %1347 = vmatprep.subr.mxu0 0.0
      %1348 = vmatpush1.xpose.msra.mxu0 0.0
      %1349 = vmatprep.subr.mxu0 0.0
      %1350 = vmatpush1.xpose.msra.mxu0 0.0
      %1351 = vmatprep.subr.mxu0 0.0
      %1352 = vmatpush1.xpose.msra.mxu0 0.0
      %1353 = vmatprep.subr.mxu0 0.0
      %1354 = vmatpush1.xpose.msra.mxu0 0.0
      %1355 = vmatprep.subr.mxu0 0.0
      %1356 = vmatpush1.xpose.msra.mxu0 0.0
      %1357 = vmatprep.subr.mxu0 0.0
      %1358 = vmatpush1.xpose.msra.mxu0 0.0
      %1359 = vmatprep.subr.mxu0 0.0
      %1360 = vmatpush1.xpose.msra.mxu0 0.0
      %1361 = vmatprep.subr.mxu0 0.0
      %1362 = vmatpush1.xpose.msra.mxu0 0.0
      %1363 = vmatprep.subr.mxu0 0.0
      %1364 = vmatpush1.xpose.msra.mxu0 0.0
      %1365 = vmatprep.subr.mxu0 0.0
      %1366 = vmatpush1.xpose.msra.mxu0 0.0
      %1367 = vmatprep.subr.mxu0 0.0
      %1368 = vmatpush1.xpose.msra.mxu0 0.0
      %1369 = vmatprep.subr.mxu0 0.0
      %1370 = vmatpush1.xpose.msra.mxu0 0.0
      %1371 = vmatprep.subr.mxu0 0.0
      %1372 = vmatpush1.xpose.msra.mxu0 0.0
      %1373 = vmatprep.subr.mxu0 0.0
      %1374 = vmatpush1.xpose.msra.mxu0 0.0
      %1375 = vmatprep.subr.mxu0 0.0
      %1376 = vmatpush1.xpose.msra.mxu0 0.0
      %1377 = vmatprep.subr.mxu0 0.0
      %1378 = vmatpush1.xpose.msra.mxu0 0.0
      %1379 = vmatprep.subr.mxu0 0.0
      %1380 = vmatpush1.xpose.msra.mxu0 0.0
      %1381 = vmatprep.subr.mxu0 0.0
      %1382 = vmatpush1.xpose.msra.mxu0 0.0
      %1383 = vmatprep.subr.mxu0 0.0
      %1384 = vmatpush1.xpose.msra.mxu0 0.0
      %1385 = vmatprep.subr.mxu0 0.0
      %1386 = vmatpush1.xpose.msra.mxu0 0.0
      %1387 = vmatprep.subr.mxu0 0.0
      %1388 = vmatpush1.xpose.msra.mxu0 0.0
      %1389 = vmatprep.subr.mxu0 0.0
      %1390 = vmatpush1.xpose.msra.mxu0 0.0
      %1391 = vmatprep.subr.mxu0 0.0
      %1392 = vmatpush1.xpose.msra.mxu0 0.0
      %1393 = vmatprep.subr.mxu0 0.0
      %1394 = vmatpush1.xpose.msra.mxu0 0.0
      %1395 = vmatprep.mubr.f32.mxu0 0.0
      %v1396 = vand.u32 %v906, 4294901760
      %1397 = vmatmul.mubr.f32.gmra.mrb[0].mxu0 %v1396
      %v1398 = vpop.f32.mrb[0].mxu0
      %v1399 = vadd.f32 %v1298, %v1398
      %v1400 = vpop.f32.mrb[0].mxu0
      %1401 = vmatprep.mubr.f32.mxu0 0.0
      %v1402 = vand.u32 %v909, 4294901760
      %1403 = vmatmul.mubr.f32.gmra.mrb[0].mxu0 %v1402
      %v1404 = vpop.f32.mrb[0].mxu0
      %v1405 = vadd.f32 %v1306, %v1404
      %v1406 = vpop.f32.mrb[0].mxu0
      %1407 = vmatprep.mubr.f32.mxu0 0.0
      %v1408 = vand.u32 %v912, 4294901760
      %1409 = vmatmul.mubr.f32.gmra.mrb[0].mxu0 %v1408
      %v1410 = vpop.f32.mrb[0].mxu0
      %v1411 = vadd.f32 %v1314, %v1410
      %v1412 = vpop.f32.mrb[0].mxu0
      %1413 = vmatprep.mubr.f32.mxu0 0.0
      %v1414 = vand.u32 %v915, 4294901760
      %1415 = vmatmul.mubr.f32.gmra.mrb[0].mxu0 %v1414
      %v1416 = vpop.f32.mrb[0].mxu0
      %v1417 = vadd.f32 %v1322, %v1416
      %v1418 = vpop.f32.mrb[0].mxu0
      %1419 = vdwg.mxu0
      %1420 = vmatprep.subr.mxu0 0.0
      %v1421 = vand.u32 %v918, 4294901760
      %1422 = vmatpush1.xpose.msra.mxu0 %v1421
      %1423 = vmatprep.subr.mxu0 0.0
      %v1424 = vand.u32 %v921, 4294901760
      %1425 = vmatpush1.xpose.msra.mxu0 %v1424
      %1426 = vmatprep.subr.mxu0 0.0
      %1427 = vmatpush1.xpose.msra.mxu0 0.0
      %1428 = vmatprep.subr.mxu0 0.0
      %1429 = vmatpush1.xpose.msra.mxu0 0.0
      %1430 = vmatprep.subr.mxu0 0.0
      %1431 = vmatpush1.xpose.msra.mxu0 0.0
      %1432 = vmatprep.subr.mxu0 0.0
      %1433 = vmatpush1.xpose.msra.mxu0 0.0
      %1434 = vmatprep.subr.mxu0 0.0
      %1435 = vmatpush1.xpose.msra.mxu0 0.0
      %1436 = vmatprep.subr.mxu0 0.0
      %1437 = vmatpush1.xpose.msra.mxu0 0.0
      %1438 = vmatprep.subr.mxu0 0.0
      %1439 = vmatpush1.xpose.msra.mxu0 0.0
      %1440 = vmatprep.subr.mxu0 0.0
      %1441 = vmatpush1.xpose.msra.mxu0 0.0
      %1442 = vmatprep.subr.mxu0 0.0
      %1443 = vmatpush1.xpose.msra.mxu0 0.0
      %1444 = vmatprep.subr.mxu0 0.0
      %1445 = vmatpush1.xpose.msra.mxu0 0.0
      %1446 = vmatprep.subr.mxu0 0.0
      %1447 = vmatpush1.xpose.msra.mxu0 0.0
      %1448 = vmatprep.subr.mxu0 0.0
      %1449 = vmatpush1.xpose.msra.mxu0 0.0
      %1450 = vmatprep.subr.mxu0 0.0
      %1451 = vmatpush1.xpose.msra.mxu0 0.0
      %1452 = vmatprep.subr.mxu0 0.0
      %1453 = vmatpush1.xpose.msra.mxu0 0.0
      %1454 = vmatprep.subr.mxu0 0.0
      %1455 = vmatpush1.xpose.msra.mxu0 0.0
      %1456 = vmatprep.subr.mxu0 0.0
      %1457 = vmatpush1.xpose.msra.mxu0 0.0
      %1458 = vmatprep.subr.mxu0 0.0
      %1459 = vmatpush1.xpose.msra.mxu0 0.0
      %1460 = vmatprep.subr.mxu0 0.0
      %1461 = vmatpush1.xpose.msra.mxu0 0.0
      %1462 = vmatprep.subr.mxu0 0.0
      %1463 = vmatpush1.xpose.msra.mxu0 0.0
      %1464 = vmatprep.subr.mxu0 0.0
      %1465 = vmatpush1.xpose.msra.mxu0 0.0
      %1466 = vmatprep.subr.mxu0 0.0
      %1467 = vmatpush1.xpose.msra.mxu0 0.0
      %1468 = vmatprep.subr.mxu0 0.0
      %1469 = vmatpush1.xpose.msra.mxu0 0.0
      %1470 = vmatprep.subr.mxu0 0.0
      %1471 = vmatpush1.xpose.msra.mxu0 0.0
      %1472 = vmatprep.subr.mxu0 0.0
      %1473 = vmatpush1.xpose.msra.mxu0 0.0
      %1474 = vmatprep.subr.mxu0 0.0
      %1475 = vmatpush1.xpose.msra.mxu0 0.0
      %1476 = vmatprep.subr.mxu0 0.0
      %1477 = vmatpush1.xpose.msra.mxu0 0.0
      %1478 = vmatprep.subr.mxu0 0.0
      %1479 = vmatpush1.xpose.msra.mxu0 0.0
      %1480 = vmatprep.subr.mxu0 0.0
      %1481 = vmatpush1.xpose.msra.mxu0 0.0
      %1482 = vmatprep.subr.mxu0 0.0
      %1483 = vmatpush1.xpose.msra.mxu0 0.0
      %1484 = vmatprep.subr.mxu0 0.0
      %1485 = vmatpush1.xpose.msra.mxu0 0.0
      %1486 = vmatprep.mubr.f32.mxu0 0.0
      %v1487 = vand.u32 %v906, 4294901760
      %1488 = vmatmul.mubr.f32.gmra.mrb[0].mxu0 %v1487
      %v1489 = vpop.f32.mrb[0].mxu0
      %v1490 = vadd.f32 %v1399, %v1489
      %v1491 = vpop.f32.mrb[0].mxu0
      %1492 = vmatprep.mubr.f32.mxu0 0.0
      %v1493 = vand.u32 %v909, 4294901760
      %1494 = vmatmul.mubr.f32.gmra.mrb[0].mxu0 %v1493
      %v1495 = vpop.f32.mrb[0].mxu0
      %v1496 = vadd.f32 %v1405, %v1495
      %v1497 = vpop.f32.mrb[0].mxu0
      %1498 = vmatprep.mubr.f32.mxu0 0.0
      %v1499 = vand.u32 %v912, 4294901760
      %1500 = vmatmul.mubr.f32.gmra.mrb[0].mxu0 %v1499
      %v1501 = vpop.f32.mrb[0].mxu0
      %v1502 = vadd.f32 %v1411, %v1501
      %v1503 = vpop.f32.mrb[0].mxu0
      %1504 = vmatprep.mubr.f32.mxu0 0.0
      %v1505 = vand.u32 %v915, 4294901760
      %1506 = vmatmul.mubr.f32.gmra.mrb[0].mxu0 %v1505
      %v1507 = vpop.f32.mrb[0].mxu0
      %v1508 = vadd.f32 %v1417, %v1507
      %v1509 = vpop.f32.mrb[0].mxu0
      %1510 = vdwg.mxu0
      %vm1511 = vcmask 130048
      %v1512 = vsel %vm1511, %v1490, -inf
      %v1513 = vsel %vm1511, %v1496, -inf
      %v1514 = vsel %vm1511, %v1502, -inf
      %v1515 = vsel %vm1511, %v1508, -inf
      %v1516 = vmax.f32 %v1512, %v1513
      %v1517 = vmax.f32 %v1514, %v1515
      %v1518 = vmax.f32 %v1516, %v1517
      %v1519 = vrot.slane %v1518, 4
      %v1520 = vmax.f32 %v1518, %v1519
      %v1521 = vrot.slane %v1520, 2
      %v1522 = vmax.f32 %v1520, %v1521
      %v1523 = vrot.slane %v1522, 1
      %v1524 = vmax.f32 %v1522, %v1523
      %v1525 = vsub.f32 %v1490, %v1524
      %v1526 = vsub.f32 %v1496, %v1524
      %v1527 = vsub.f32 %v1502, %v1524
      %v1528 = vsub.f32 %v1508, %v1524
      %v1529 = vmul.f32 %v1525, 1.442695
      %v1530 = vpow.pop %v1529
      %v1531 = vmul.f32 %v1526, 1.442695
      %v1532 = vpow.pop %v1531
      %v1533 = vmul.f32 %v1527, 1.442695
      %v1534 = vpow.pop %v1533
      %v1535 = vmul.f32 %v1528, 1.442695
      %v1536 = vpow.pop %v1535
      %v1537 = vsel %vm1511, %v1530, 0.0
      %v1538 = vsel %vm1511, %v1532, 0.0
      %v1539 = vadd.f32 %v1537, %v1538
      %v1540 = vsel %vm1511, %v1534, 0.0
      %v1541 = vadd.f32 %v1539, %v1540
      %v1542 = vsel %vm1511, %v1536, 0.0
      %v1543 = vadd.f32 %v1541, %v1542
      %v1544 = vrot.slane %v1543, 4
      %v1545 = vadd.f32 %v1543, %v1544
      %v1546 = vrot.slane %v1545, 2
      %v1547 = vadd.f32 %v1545, %v1546
      %v1548 = vrot.slane %v1547, 1
      %v1549 = vadd.f32 %v1547, %v1548
      %v1550 = vrcp.pop %v1549
      %v1551 = vmul.f32 %v1549, %v1550
      %v1552 = vsub.f32 2.0, %v1551
      %v1553 = vmul.f32 %v1550, %v1552
      %v1554 = vmul.f32 %v1530, %v1553
      %v1555 = vmul.f32 %v1532, %v1553
      %v1556 = vmul.f32 %v1534, %v1553
      %v1557 = vmul.f32 %v1536, %v1553
      %v1558 = vld [vmem:[#allocation5] sm:$0xff]
      %v1559 = vld [vmem:[#allocation5 + $0x8] sm:$0xff]
      %v1560 = vld [vmem:[#allocation5 + $0x10] sm:$0xff]
      %v1561 = vld [vmem:[#allocation5 + $0x18] sm:$0xff]
      %v1562 = vsel %vm1511, %v1554, 0.0
      %1563 = vadd.xlane.f32.xlu0 %v1562
      %v1564 = vpop.xlane.xlu0 %1563
      %v1565 = vsel %vm1511, %v1555, 0.0
      %1566 = vadd.xlane.f32.xlu0 %v1565
      %v1567 = vpop.xlane.xlu0 %1566
      %v1568 = vsel %vm1511, %v1556, 0.0
      %1569 = vadd.xlane.f32.xlu0 %v1568
      %v1570 = vpop.xlane.xlu0 %1569
      %v1571 = vsel %vm1511, %v1557, 0.0
      %1572 = vadd.xlane.f32.xlu0 %v1571
      %v1573 = vpop.xlane.xlu0 %1572
      %v1574 = vadd.f32 %v1558, %v1564
      %v1575 = vadd.f32 %v1559, %v1567
      %v1576 = vadd.f32 %v1560, %v1570
      %v1577 = vadd.f32 %v1561, %v1573
      %vm1578 = vcmask 7168
      %1579 = vst.msk [vmem:[#allocation5] sm:$0xff] %vm1578, %v1574
      %1580 = vst.msk [vmem:[#allocation5 + $0x8] sm:$0xff] %vm1578, %v1575
      %1581 = vst.msk [vmem:[#allocation5 + $0x10] sm:$0xff] %vm1578, %v1576
      %1582 = vst.msk [vmem:[#allocation5 + $0x18] sm:$0xff] %vm1578, %v1577
      %v1583 = vld [vmem:[#allocation4] sm:$0xff]
      %v1584 = vld [vmem:[#allocation4 + $0x8] sm:$0xff]
      %v1585 = vld [vmem:[#allocation4 + $0x10] sm:$0xff]
      %v1586 = vld [vmem:[#allocation4 + $0x18] sm:$0xff]
      %v1588 = vsel %vm1511, %v1554, 0
      %v1591 = vsel %vm1511, %v1555, 0
      %v1594 = vsel %vm1511, %v1556, 0
      %v1597 = vsel %vm1511, %v1557, 0
      %1599 = vmatprep.subr.mxu0 0.0
      %v1600 = vand.u32 %v898, 4294901760
      %1601 = vmatpush1.msra.mxu0 %v1600
      %1602 = vmatprep.subr.mxu0 0.0
      %v1603 = vand.u32 %v899, 4294901760
      %1604 = vmatpush1.msra.mxu0 %v1603
      %1605 = vmatprep.subr.mxu0 0.0
      %1606 = vmatpush1.msra.mxu0 0.0
      %1607 = vmatprep.subr.mxu0 0.0
      %1608 = vmatpush1.msra.mxu0 0.0
      %1609 = vmatprep.subr.mxu0 0.0
      %1610 = vmatpush1.msra.mxu0 0.0
      %1611 = vmatprep.subr.mxu0 0.0
      %1612 = vmatpush1.msra.mxu0 0.0
      %1613 = vmatprep.subr.mxu0 0.0
      %1614 = vmatpush1.msra.mxu0 0.0
      %1615 = vmatprep.subr.mxu0 0.0
      %1616 = vmatpush1.msra.mxu0 0.0
      %1617 = vmatprep.subr.mxu0 0.0
      %1618 = vmatpush1.msra.mxu0 0.0
      %1619 = vmatprep.subr.mxu0 0.0
      %1620 = vmatpush1.msra.mxu0 0.0
      %1621 = vmatprep.subr.mxu0 0.0
      %1622 = vmatpush1.msra.mxu0 0.0
      %1623 = vmatprep.subr.mxu0 0.0
      %1624 = vmatpush1.msra.mxu0 0.0
      %1625 = vmatprep.subr.mxu0 0.0
      %1626 = vmatpush1.msra.mxu0 0.0
      %1627 = vmatprep.subr.mxu0 0.0
      %1628 = vmatpush1.msra.mxu0 0.0
      %1629 = vmatprep.subr.mxu0 0.0
      %1630 = vmatpush1.msra.mxu0 0.0
      %1631 = vmatprep.subr.mxu0 0.0
      %1632 = vmatpush1.msra.mxu0 0.0
      %1633 = vmatprep.subr.mxu0 0.0
      %1634 = vmatpush1.msra.mxu0 0.0
      %1635 = vmatprep.subr.mxu0 0.0
      %1636 = vmatpush1.msra.mxu0 0.0
      %1637 = vmatprep.subr.mxu0 0.0
      %1638 = vmatpush1.msra.mxu0 0.0
      %1639 = vmatprep.subr.mxu0 0.0
      %1640 = vmatpush1.msra.mxu0 0.0
      %1641 = vmatprep.subr.mxu0 0.0
      %1642 = vmatpush1.msra.mxu0 0.0
      %1643 = vmatprep.subr.mxu0 0.0
      %1644 = vmatpush1.msra.mxu0 0.0
      %1645 = vmatprep.subr.mxu0 0.0
      %1646 = vmatpush1.msra.mxu0 0.0
      %1647 = vmatprep.subr.mxu0 0.0
      %1648 = vmatpush1.msra.mxu0 0.0
      %1649 = vmatprep.subr.mxu0 0.0
      %1650 = vmatpush1.msra.mxu0 0.0
      %1651 = vmatprep.subr.mxu0 0.0
      %1652 = vmatpush1.msra.mxu0 0.0
      %1653 = vmatprep.subr.mxu0 0.0
      %1654 = vmatpush1.msra.mxu0 0.0
      %1655 = vmatprep.subr.mxu0 0.0
      %1656 = vmatpush1.msra.mxu0 0.0
      %1657 = vmatprep.subr.mxu0 0.0
      %1658 = vmatpush1.msra.mxu0 0.0
      %1659 = vmatprep.subr.mxu0 0.0
      %1660 = vmatpush1.msra.mxu0 0.0
      %1661 = vmatprep.subr.mxu0 0.0
      %1662 = vmatpush1.msra.mxu0 0.0
      %1663 = vmatprep.subr.mxu0 0.0
      %1664 = vmatpush1.msra.mxu0 0.0
      %1665 = vmatprep.mubr.f32.mxu0 0.0
      %v1666 = vand.u32 %v1588, 4294901760
      %v1667 = vsub.f32 %v1588, %v1666
      %v1668 = vand.u32 %v1667, 4294901760
      %v1669 = vsub.f32 %v1667, %v1668
      %v1670 = vand.u32 %v1669, 4294901760
      %1671 = vmatmul.mubr.f32.gmra.mrb[0].mxu0 %v1670
      %v1672 = vpop.f32.mrb[0].mxu0
      %v1673 = vadd.f32 0.0, %v1672
      %v1674 = vpop.f32.mrb[0].mxu0
      %1675 = vmatprep.mubr.f32.mxu0 0.0
      %v1676 = vand.u32 %v1591, 4294901760
      %v1677 = vsub.f32 %v1591, %v1676
      %v1678 = vand.u32 %v1677, 4294901760
      %v1679 = vsub.f32 %v1677, %v1678
      %v1680 = vand.u32 %v1679, 4294901760
      %1681 = vmatmul.mubr.f32.gmra.mrb[0].mxu0 %v1680
      %v1682 = vpop.f32.mrb[0].mxu0
      %v1683 = vadd.f32 0.0, %v1682
      %v1684 = vpop.f32.mrb[0].mxu0
      %1685 = vmatprep.mubr.f32.mxu0 0.0
      %v1686 = vand.u32 %v1594, 4294901760
      %v1687 = vsub.f32 %v1594, %v1686
      %v1688 = vand.u32 %v1687, 4294901760
      %v1689 = vsub.f32 %v1687, %v1688
      %v1690 = vand.u32 %v1689, 4294901760
      %1691 = vmatmul.mubr.f32.gmra.mrb[0].mxu0 %v1690
      %v1692 = vpop.f32.mrb[0].mxu0
      %v1693 = vadd.f32 0.0, %v1692
      %v1694 = vpop.f32.mrb[0].mxu0
      %1695 = vmatprep.mubr.f32.mxu0 0.0
      %v1696 = vand.u32 %v1597, 4294901760
      %v1697 = vsub.f32 %v1597, %v1696
      %v1698 = vand.u32 %v1697, 4294901760
      %v1699 = vsub.f32 %v1697, %v1698
      %v1700 = vand.u32 %v1699, 4294901760
      %1701 = vmatmul.mubr.f32.gmra.mrb[0].mxu0 %v1700
      %v1702 = vpop.f32.mrb[0].mxu0
      %v1703 = vadd.f32 0.0, %v1702
      %v1704 = vpop.f32.mrb[0].mxu0
      %1705 = vdwg.mxu0
      %1706 = vmatprep.subr.mxu0 0.0
      %v1707 = vand.u32 %v898, 4294901760
      %v1708 = vsub.f32 %v898, %v1707
      %v1709 = vand.u32 %v1708, 4294901760
      %v1710 = vsub.f32 %v1708, %v1709
      %v1711 = vand.u32 %v1710, 4294901760
      %1712 = vmatpush1.msra.mxu0 %v1711
      %1713 = vmatprep.subr.mxu0 0.0
      %v1714 = vand.u32 %v899, 4294901760
      %v1715 = vsub.f32 %v899, %v1714
      %v1716 = vand.u32 %v1715, 4294901760
      %v1717 = vsub.f32 %v1715, %v1716
      %v1718 = vand.u32 %v1717, 4294901760
      %1719 = vmatpush1.msra.mxu0 %v1718
      %1720 = vmatprep.subr.mxu0 0.0
      %1721 = vmatpush1.msra.mxu0 0.0
      %1722 = vmatprep.subr.mxu0 0.0
      %1723 = vmatpush1.msra.mxu0 0.0
      %1724 = vmatprep.subr.mxu0 0.0
      %1725 = vmatpush1.msra.mxu0 0.0
      %1726 = vmatprep.subr.mxu0 0.0
      %1727 = vmatpush1.msra.mxu0 0.0
      %1728 = vmatprep.subr.mxu0 0.0
      %1729 = vmatpush1.msra.mxu0 0.0
      %1730 = vmatprep.subr.mxu0 0.0
      %1731 = vmatpush1.msra.mxu0 0.0
      %1732 = vmatprep.subr.mxu0 0.0
      %1733 = vmatpush1.msra.mxu0 0.0
      %1734 = vmatprep.subr.mxu0 0.0
      %1735 = vmatpush1.msra.mxu0 0.0
      %1736 = vmatprep.subr.mxu0 0.0
      %1737 = vmatpush1.msra.mxu0 0.0
      %1738 = vmatprep.subr.mxu0 0.0
      %1739 = vmatpush1.msra.mxu0 0.0
      %1740 = vmatprep.subr.mxu0 0.0
      %1741 = vmatpush1.msra.mxu0 0.0
      %1742 = vmatprep.subr.mxu0 0.0
      %1743 = vmatpush1.msra.mxu0 0.0
      %1744 = vmatprep.subr.mxu0 0.0
      %1745 = vmatpush1.msra.mxu0 0.0
      %1746 = vmatprep.subr.mxu0 0.0
      %1747 = vmatpush1.msra.mxu0 0.0
      %1748 = vmatprep.subr.mxu0 0.0
      %1749 = vmatpush1.msra.mxu0 0.0
      %1750 = vmatprep.subr.mxu0 0.0
      %1751 = vmatpush1.msra.mxu0 0.0
      %1752 = vmatprep.subr.mxu0 0.0
      %1753 = vmatpush1.msra.mxu0 0.0
      %1754 = vmatprep.subr.mxu0 0.0
      %1755 = vmatpush1.msra.mxu0 0.0
      %1756 = vmatprep.subr.mxu0 0.0
      %1757 = vmatpush1.msra.mxu0 0.0
      %1758 = vmatprep.subr.mxu0 0.0
      %1759 = vmatpush1.msra.mxu0 0.0
      %1760 = vmatprep.subr.mxu0 0.0
      %1761 = vmatpush1.msra.mxu0 0.0
      %1762 = vmatprep.subr.mxu0 0.0
      %1763 = vmatpush1.msra.mxu0 0.0
      %1764 = vmatprep.subr.mxu0 0.0
      %1765 = vmatpush1.msra.mxu0 0.0
      %1766 = vmatprep.subr.mxu0 0.0
      %1767 = vmatpush1.msra.mxu0 0.0
      %1768 = vmatprep.subr.mxu0 0.0
      %1769 = vmatpush1.msra.mxu0 0.0
      %1770 = vmatprep.subr.mxu0 0.0
      %1771 = vmatpush1.msra.mxu0 0.0
      %1772 = vmatprep.subr.mxu0 0.0
      %1773 = vmatpush1.msra.mxu0 0.0
      %1774 = vmatprep.subr.mxu0 0.0
      %1775 = vmatpush1.msra.mxu0 0.0
      %1776 = vmatprep.subr.mxu0 0.0
      %1777 = vmatpush1.msra.mxu0 0.0
      %1778 = vmatprep.subr.mxu0 0.0
      %1779 = vmatpush1.msra.mxu0 0.0
      %1780 = vmatprep.mubr.f32.mxu0 0.0
      %v1781 = vand.u32 %v1588, 4294901760
      %1782 = vmatmul.mubr.f32.gmra.mrb[0].mxu0 %v1781
      %v1783 = vpop.f32.mrb[0].mxu0
      %v1784 = vadd.f32 %v1673, %v1783
      %v1785 = vpop.f32.mrb[0].mxu0
      %1786 = vmatprep.mubr.f32.mxu0 0.0
      %v1787 = vand.u32 %v1591, 4294901760
      %1788 = vmatmul.mubr.f32.gmra.mrb[0].mxu0 %v1787
      %v1789 = vpop.f32.mrb[0].mxu0
      %v1790 = vadd.f32 %v1683, %v1789
      %v1791 = vpop.f32.mrb[0].mxu0
      %1792 = vmatprep.mubr.f32.mxu0 0.0
      %v1793 = vand.u32 %v1594, 4294901760
      %1794 = vmatmul.mubr.f32.gmra.mrb[0].mxu0 %v1793
      %v1795 = vpop.f32.mrb[0].mxu0
      %v1796 = vadd.f32 %v1693, %v1795
      %v1797 = vpop.f32.mrb[0].mxu0
      %1798 = vmatprep.mubr.f32.mxu0 0.0
      %v1799 = vand.u32 %v1597, 4294901760
      %1800 = vmatmul.mubr.f32.gmra.mrb[0].mxu0 %v1799
      %v1801 = vpop.f32.mrb[0].mxu0
      %v1802 = vadd.f32 %v1703, %v1801
      %v1803 = vpop.f32.mrb[0].mxu0
      %1804 = vdwg.mxu0
      %1805 = vmatprep.subr.mxu0 0.0
      %v1806 = vand.u32 %v898, 4294901760
      %v1807 = vsub.f32 %v898, %v1806
      %1808 = vmatpush1.msra.mxu0 %v1807
      %1809 = vmatprep.subr.mxu0 0.0
      %v1810 = vand.u32 %v899, 4294901760
      %v1811 = vsub.f32 %v899, %v1810
      %1812 = vmatpush1.msra.mxu0 %v1811
      %1813 = vmatprep.subr.mxu0 0.0
      %1814 = vmatpush1.msra.mxu0 0.0
      %1815 = vmatprep.subr.mxu0 0.0
      %1816 = vmatpush1.msra.mxu0 0.0
      %1817 = vmatprep.subr.mxu0 0.0
      %1818 = vmatpush1.msra.mxu0 0.0
      %1819 = vmatprep.subr.mxu0 0.0
      %1820 = vmatpush1.msra.mxu0 0.0
      %1821 = vmatprep.subr.mxu0 0.0
      %1822 = vmatpush1.msra.mxu0 0.0
      %1823 = vmatprep.subr.mxu0 0.0
      %1824 = vmatpush1.msra.mxu0 0.0
      %1825 = vmatprep.subr.mxu0 0.0
      %1826 = vmatpush1.msra.mxu0 0.0
      %1827 = vmatprep.subr.mxu0 0.0
      %1828 = vmatpush1.msra.mxu0 0.0
      %1829 = vmatprep.subr.mxu0 0.0
      %1830 = vmatpush1.msra.mxu0 0.0
      %1831 = vmatprep.subr.mxu0 0.0
      %1832 = vmatpush1.msra.mxu0 0.0
      %1833 = vmatprep.subr.mxu0 0.0
      %1834 = vmatpush1.msra.mxu0 0.0
      %1835 = vmatprep.subr.mxu0 0.0
      %1836 = vmatpush1.msra.mxu0 0.0
      %1837 = vmatprep.subr.mxu0 0.0
      %1838 = vmatpush1.msra.mxu0 0.0
      %1839 = vmatprep.subr.mxu0 0.0
      %1840 = vmatpush1.msra.mxu0 0.0
      %1841 = vmatprep.subr.mxu0 0.0
      %1842 = vmatpush1.msra.mxu0 0.0
      %1843 = vmatprep.subr.mxu0 0.0
      %1844 = vmatpush1.msra.mxu0 0.0
      %1845 = vmatprep.subr.mxu0 0.0
      %1846 = vmatpush1.msra.mxu0 0.0
      %1847 = vmatprep.subr.mxu0 0.0
      %1848 = vmatpush1.msra.mxu0 0.0
      %1849 = vmatprep.subr.mxu0 0.0
      %1850 = vmatpush1.msra.mxu0 0.0
      %1851 = vmatprep.subr.mxu0 0.0
      %1852 = vmatpush1.msra.mxu0 0.0
      %1853 = vmatprep.subr.mxu0 0.0
      %1854 = vmatpush1.msra.mxu0 0.0
      %1855 = vmatprep.subr.mxu0 0.0
      %1856 = vmatpush1.msra.mxu0 0.0
      %1857 = vmatprep.subr.mxu0 0.0
      %1858 = vmatpush1.msra.mxu0 0.0
      %1859 = vmatprep.subr.mxu0 0.0
      %1860 = vmatpush1.msra.mxu0 0.0
      %1861 = vmatprep.subr.mxu0 0.0
      %1862 = vmatpush1.msra.mxu0 0.0
      %1863 = vmatprep.subr.mxu0 0.0
      %1864 = vmatpush1.msra.mxu0 0.0
      %1865 = vmatprep.subr.mxu0 0.0
      %1866 = vmatpush1.msra.mxu0 0.0
      %1867 = vmatprep.subr.mxu0 0.0
      %1868 = vmatpush1.msra.mxu0 0.0
      %1869 = vmatprep.subr.mxu0 0.0
      %1870 = vmatpush1.msra.mxu0 0.0
      %1871 = vmatprep.subr.mxu0 0.0
      %1872 = vmatpush1.msra.mxu0 0.0
      %1873 = vmatprep.mubr.f32.mxu0 0.0
      %v1874 = vand.u32 %v1588, 4294901760
      %v1875 = vsub.f32 %v1588, %v1874
      %1876 = vmatmul.mubr.f32.gmra.mrb[0].mxu0 %v1875
      %v1877 = vpop.f32.mrb[0].mxu0
      %v1878 = vadd.f32 %v1784, %v1877
      %v1879 = vpop.f32.mrb[0].mxu0
      %1880 = vmatprep.mubr.f32.mxu0 0.0
      %v1881 = vand.u32 %v1591, 4294901760
      %v1882 = vsub.f32 %v1591, %v1881
      %1883 = vmatmul.mubr.f32.gmra.mrb[0].mxu0 %v1882
      %v1884 = vpop.f32.mrb[0].mxu0
      %v1885 = vadd.f32 %v1790, %v1884
      %v1886 = vpop.f32.mrb[0].mxu0
      %1887 = vmatprep.mubr.f32.mxu0 0.0
      %v1888 = vand.u32 %v1594, 4294901760
      %v1889 = vsub.f32 %v1594, %v1888
      %1890 = vmatmul.mubr.f32.gmra.mrb[0].mxu0 %v1889
      %v1891 = vpop.f32.mrb[0].mxu0
      %v1892 = vadd.f32 %v1796, %v1891
      %v1893 = vpop.f32.mrb[0].mxu0
      %1894 = vmatprep.mubr.f32.mxu0 0.0
      %v1895 = vand.u32 %v1597, 4294901760
      %v1896 = vsub.f32 %v1597, %v1895
      %1897 = vmatmul.mubr.f32.gmra.mrb[0].mxu0 %v1896
      %v1898 = vpop.f32.mrb[0].mxu0
      %v1899 = vadd.f32 %v1802, %v1898
      %v1900 = vpop.f32.mrb[0].mxu0
      %1901 = vdwg.mxu0
      %1902 = vmatprep.subr.mxu0 0.0
      %v1903 = vand.u32 %v898, 4294901760
      %1904 = vmatpush1.msra.mxu0 %v1903
      %1905 = vmatprep.subr.mxu0 0.0
      %v1906 = vand.u32 %v899, 4294901760
      %1907 = vmatpush1.msra.mxu0 %v1906
      %1908 = vmatprep.subr.mxu0 0.0
      %1909 = vmatpush1.msra.mxu0 0.0
      %1910 = vmatprep.subr.mxu0 0.0
      %1911 = vmatpush1.msra.mxu0 0.0
      %1912 = vmatprep.subr.mxu0 0.0
      %1913 = vmatpush1.msra.mxu0 0.0
      %1914 = vmatprep.subr.mxu0 0.0
      %1915 = vmatpush1.msra.mxu0 0.0
      %1916 = vmatprep.subr.mxu0 0.0
      %1917 = vmatpush1.msra.mxu0 0.0
      %1918 = vmatprep.subr.mxu0 0.0
      %1919 = vmatpush1.msra.mxu0 0.0
      %1920 = vmatprep.subr.mxu0 0.0
      %1921 = vmatpush1.msra.mxu0 0.0
      %1922 = vmatprep.subr.mxu0 0.0
      %1923 = vmatpush1.msra.mxu0 0.0
      %1924 = vmatprep.subr.mxu0 0.0
      %1925 = vmatpush1.msra.mxu0 0.0
      %1926 = vmatprep.subr.mxu0 0.0
      %1927 = vmatpush1.msra.mxu0 0.0
      %1928 = vmatprep.subr.mxu0 0.0
      %1929 = vmatpush1.msra.mxu0 0.0
      %1930 = vmatprep.subr.mxu0 0.0
      %1931 = vmatpush1.msra.mxu0 0.0
      %1932 = vmatprep.subr.mxu0 0.0
      %1933 = vmatpush1.msra.mxu0 0.0
      %1934 = vmatprep.subr.mxu0 0.0
      %1935 = vmatpush1.msra.mxu0 0.0
      %1936 = vmatprep.subr.mxu0 0.0
      %1937 = vmatpush1.msra.mxu0 0.0
      %1938 = vmatprep.subr.mxu0 0.0
      %1939 = vmatpush1.msra.mxu0 0.0
      %1940 = vmatprep.subr.mxu0 0.0
      %1941 = vmatpush1.msra.mxu0 0.0
      %1942 = vmatprep.subr.mxu0 0.0
      %1943 = vmatpush1.msra.mxu0 0.0
      %1944 = vmatprep.subr.mxu0 0.0
      %1945 = vmatpush1.msra.mxu0 0.0
      %1946 = vmatprep.subr.mxu0 0.0
      %1947 = vmatpush1.msra.mxu0 0.0
      %1948 = vmatprep.subr.mxu0 0.0
      %1949 = vmatpush1.msra.mxu0 0.0
      %1950 = vmatprep.subr.mxu0 0.0
      %1951 = vmatpush1.msra.mxu0 0.0
      %1952 = vmatprep.subr.mxu0 0.0
      %1953 = vmatpush1.msra.mxu0 0.0
      %1954 = vmatprep.subr.mxu0 0.0
      %1955 = vmatpush1.msra.mxu0 0.0
      %1956 = vmatprep.subr.mxu0 0.0
      %1957 = vmatpush1.msra.mxu0 0.0
      %1958 = vmatprep.subr.mxu0 0.0
      %1959 = vmatpush1.msra.mxu0 0.0
      %1960 = vmatprep.subr.mxu0 0.0
      %1961 = vmatpush1.msra.mxu0 0.0
      %1962 = vmatprep.subr.mxu0 0.0
      %1963 = vmatpush1.msra.mxu0 0.0
      %1964 = vmatprep.subr.mxu0 0.0
      %1965 = vmatpush1.msra.mxu0 0.0
      %1966 = vmatprep.subr.mxu0 0.0
      %1967 = vmatpush1.msra.mxu0 0.0
      %1968 = vmatprep.mubr.f32.mxu0 0.0
      %v1969 = vand.u32 %v1588, 4294901760
      %v1970 = vsub.f32 %v1588, %v1969
      %v1971 = vand.u32 %v1970, 4294901760
      %1972 = vmatmul.mubr.f32.gmra.mrb[0].mxu0 %v1971
      %v1973 = vpop.f32.mrb[0].mxu0
      %v1974 = vadd.f32 %v1878, %v1973
      %v1975 = vpop.f32.mrb[0].mxu0
      %1976 = vmatprep.mubr.f32.mxu0 0.0
      %v1977 = vand.u32 %v1591, 4294901760
      %v1978 = vsub.f32 %v1591, %v1977
      %v1979 = vand.u32 %v1978, 4294901760
      %1980 = vmatmul.mubr.f32.gmra.mrb[0].mxu0 %v1979
      %v1981 = vpop.f32.mrb[0].mxu0
      %v1982 = vadd.f32 %v1885, %v1981
      %v1983 = vpop.f32.mrb[0].mxu0
      %1984 = vmatprep.mubr.f32.mxu0 0.0
      %v1985 = vand.u32 %v1594, 4294901760
      %v1986 = vsub.f32 %v1594, %v1985
      %v1987 = vand.u32 %v1986, 4294901760
      %1988 = vmatmul.mubr.f32.gmra.mrb[0].mxu0 %v1987
      %v1989 = vpop.f32.mrb[0].mxu0
      %v1990 = vadd.f32 %v1892, %v1989
      %v1991 = vpop.f32.mrb[0].mxu0
      %1992 = vmatprep.mubr.f32.mxu0 0.0
      %v1993 = vand.u32 %v1597, 4294901760
      %v1994 = vsub.f32 %v1597, %v1993
      %v1995 = vand.u32 %v1994, 4294901760
      %1996 = vmatmul.mubr.f32.gmra.mrb[0].mxu0 %v1995
      %v1997 = vpop.f32.mrb[0].mxu0
      %v1998 = vadd.f32 %v1899, %v1997
      %v1999 = vpop.f32.mrb[0].mxu0
      %2000 = vdwg.mxu0
      %2001 = vmatprep.subr.mxu0 0.0
      %v2002 = vand.u32 %v898, 4294901760
      %v2003 = vsub.f32 %v898, %v2002
      %v2004 = vand.u32 %v2003, 4294901760
      %2005 = vmatpush1.msra.mxu0 %v2004
      %2006 = vmatprep.subr.mxu0 0.0
      %v2007 = vand.u32 %v899, 4294901760
      %v2008 = vsub.f32 %v899, %v2007
      %v2009 = vand.u32 %v2008, 4294901760
      %2010 = vmatpush1.msra.mxu0 %v2009
      %2011 = vmatprep.subr.mxu0 0.0
      %2012 = vmatpush1.msra.mxu0 0.0
      %2013 = vmatprep.subr.mxu0 0.0
      %2014 = vmatpush1.msra.mxu0 0.0
      %2015 = vmatprep.subr.mxu0 0.0
      %2016 = vmatpush1.msra.mxu0 0.0
      %2017 = vmatprep.subr.mxu0 0.0
      %2018 = vmatpush1.msra.mxu0 0.0
      %2019 = vmatprep.subr.mxu0 0.0
      %2020 = vmatpush1.msra.mxu0 0.0
      %2021 = vmatprep.subr.mxu0 0.0
      %2022 = vmatpush1.msra.mxu0 0.0
      %2023 = vmatprep.subr.mxu0 0.0
      %2024 = vmatpush1.msra.mxu0 0.0
      %2025 = vmatprep.subr.mxu0 0.0
      %2026 = vmatpush1.msra.mxu0 0.0
      %2027 = vmatprep.subr.mxu0 0.0
      %2028 = vmatpush1.msra.mxu0 0.0
      %2029 = vmatprep.subr.mxu0 0.0
      %2030 = vmatpush1.msra.mxu0 0.0
      %2031 = vmatprep.subr.mxu0 0.0
      %2032 = vmatpush1.msra.mxu0 0.0
      %2033 = vmatprep.subr.mxu0 0.0
      %2034 = vmatpush1.msra.mxu0 0.0
      %2035 = vmatprep.subr.mxu0 0.0
      %2036 = vmatpush1.msra.mxu0 0.0
      %2037 = vmatprep.subr.mxu0 0.0
      %2038 = vmatpush1.msra.mxu0 0.0
      %2039 = vmatprep.subr.mxu0 0.0
      %2040 = vmatpush1.msra.mxu0 0.0
      %2041 = vmatprep.subr.mxu0 0.0
      %2042 = vmatpush1.msra.mxu0 0.0
      %2043 = vmatprep.subr.mxu0 0.0
      %2044 = vmatpush1.msra.mxu0 0.0
      %2045 = vmatprep.subr.mxu0 0.0
      %2046 = vmatpush1.msra.mxu0 0.0
      %2047 = vmatprep.subr.mxu0 0.0
      %2048 = vmatpush1.msra.mxu0 0.0
      %2049 = vmatprep.subr.mxu0 0.0
      %2050 = vmatpush1.msra.mxu0 0.0
      %2051 = vmatprep.subr.mxu0 0.0
      %2052 = vmatpush1.msra.mxu0 0.0
      %2053 = vmatprep.subr.mxu0 0.0
      %2054 = vmatpush1.msra.mxu0 0.0
      %2055 = vmatprep.subr.mxu0 0.0
      %2056 = vmatpush1.msra.mxu0 0.0
      %2057 = vmatprep.subr.mxu0 0.0
      %2058 = vmatpush1.msra.mxu0 0.0
      %2059 = vmatprep.subr.mxu0 0.0
      %2060 = vmatpush1.msra.mxu0 0.0
      %2061 = vmatprep.subr.mxu0 0.0
      %2062 = vmatpush1.msra.mxu0 0.0
      %2063 = vmatprep.subr.mxu0 0.0
      %2064 = vmatpush1.msra.mxu0 0.0
      %2065 = vmatprep.subr.mxu0 0.0
      %2066 = vmatpush1.msra.mxu0 0.0
      %2067 = vmatprep.subr.mxu0 0.0
      %2068 = vmatpush1.msra.mxu0 0.0
      %2069 = vmatprep.subr.mxu0 0.0
      %2070 = vmatpush1.msra.mxu0 0.0
      %2071 = vmatprep.mubr.f32.mxu0 0.0
      %v2072 = vand.u32 %v1588, 4294901760
      %2073 = vmatmul.mubr.f32.gmra.mrb[0].mxu0 %v2072
      %v2074 = vpop.f32.mrb[0].mxu0
      %v2075 = vadd.f32 %v1974, %v2074
      %v2076 = vpop.f32.mrb[0].mxu0
      %2077 = vmatprep.mubr.f32.mxu0 0.0
      %v2078 = vand.u32 %v1591, 4294901760
      %2079 = vmatmul.mubr.f32.gmra.mrb[0].mxu0 %v2078
      %v2080 = vpop.f32.mrb[0].mxu0
      %v2081 = vadd.f32 %v1982, %v2080
      %v2082 = vpop.f32.mrb[0].mxu0
      %2083 = vmatprep.mubr.f32.mxu0 0.0
      %v2084 = vand.u32 %v1594, 4294901760
      %2085 = vmatmul.mubr.f32.gmra.mrb[0].mxu0 %v2084
      %v2086 = vpop.f32.mrb[0].mxu0
      %v2087 = vadd.f32 %v1990, %v2086
      %v2088 = vpop.f32.mrb[0].mxu0
      %2089 = vmatprep.mubr.f32.mxu0 0.0
      %v2090 = vand.u32 %v1597, 4294901760
      %2091 = vmatmul.mubr.f32.gmra.mrb[0].mxu0 %v2090
      %v2092 = vpop.f32.mrb[0].mxu0
      %v2093 = vadd.f32 %v1998, %v2092
      %v2094 = vpop.f32.mrb[0].mxu0
      %2095 = vdwg.mxu0
      %2096 = vmatprep.subr.mxu0 0.0
      %v2097 = vand.u32 %v898, 4294901760
      %2098 = vmatpush1.msra.mxu0 %v2097
      %2099 = vmatprep.subr.mxu0 0.0
      %v2100 = vand.u32 %v899, 4294901760
      %2101 = vmatpush1.msra.mxu0 %v2100
      %2102 = vmatprep.subr.mxu0 0.0
      %2103 = vmatpush1.msra.mxu0 0.0
      %2104 = vmatprep.subr.mxu0 0.0
      %2105 = vmatpush1.msra.mxu0 0.0
      %2106 = vmatprep.subr.mxu0 0.0
      %2107 = vmatpush1.msra.mxu0 0.0
      %2108 = vmatprep.subr.mxu0 0.0
      %2109 = vmatpush1.msra.mxu0 0.0
      %2110 = vmatprep.subr.mxu0 0.0
      %2111 = vmatpush1.msra.mxu0 0.0
      %2112 = vmatprep.subr.mxu0 0.0
      %2113 = vmatpush1.msra.mxu0 0.0
      %2114 = vmatprep.subr.mxu0 0.0
      %2115 = vmatpush1.msra.mxu0 0.0
      %2116 = vmatprep.subr.mxu0 0.0
      %2117 = vmatpush1.msra.mxu0 0.0
      %2118 = vmatprep.subr.mxu0 0.0
      %2119 = vmatpush1.msra.mxu0 0.0
      %2120 = vmatprep.subr.mxu0 0.0
      %2121 = vmatpush1.msra.mxu0 0.0
      %2122 = vmatprep.subr.mxu0 0.0
      %2123 = vmatpush1.msra.mxu0 0.0
      %2124 = vmatprep.subr.mxu0 0.0
      %2125 = vmatpush1.msra.mxu0 0.0
      %2126 = vmatprep.subr.mxu0 0.0
      %2127 = vmatpush1.msra.mxu0 0.0
      %2128 = vmatprep.subr.mxu0 0.0
      %2129 = vmatpush1.msra.mxu0 0.0
      %2130 = vmatprep.subr.mxu0 0.0
      %2131 = vmatpush1.msra.mxu0 0.0
      %2132 = vmatprep.subr.mxu0 0.0
      %2133 = vmatpush1.msra.mxu0 0.0
      %2134 = vmatprep.subr.mxu0 0.0
      %2135 = vmatpush1.msra.mxu0 0.0
      %2136 = vmatprep.subr.mxu0 0.0
      %2137 = vmatpush1.msra.mxu0 0.0
      %2138 = vmatprep.subr.mxu0 0.0
      %2139 = vmatpush1.msra.mxu0 0.0
      %2140 = vmatprep.subr.mxu0 0.0
      %2141 = vmatpush1.msra.mxu0 0.0
      %2142 = vmatprep.subr.mxu0 0.0
      %2143 = vmatpush1.msra.mxu0 0.0
      %2144 = vmatprep.subr.mxu0 0.0
      %2145 = vmatpush1.msra.mxu0 0.0
      %2146 = vmatprep.subr.mxu0 0.0
      %2147 = vmatpush1.msra.mxu0 0.0
      %2148 = vmatprep.subr.mxu0 0.0
      %2149 = vmatpush1.msra.mxu0 0.0
      %2150 = vmatprep.subr.mxu0 0.0
      %2151 = vmatpush1.msra.mxu0 0.0
      %2152 = vmatprep.subr.mxu0 0.0
      %2153 = vmatpush1.msra.mxu0 0.0
      %2154 = vmatprep.subr.mxu0 0.0
      %2155 = vmatpush1.msra.mxu0 0.0
      %2156 = vmatprep.subr.mxu0 0.0
      %2157 = vmatpush1.msra.mxu0 0.0
      %2158 = vmatprep.subr.mxu0 0.0
      %2159 = vmatpush1.msra.mxu0 0.0
      %2160 = vmatprep.subr.mxu0 0.0
      %2161 = vmatpush1.msra.mxu0 0.0
      %2162 = vmatprep.mubr.f32.mxu0 0.0
      %v2163 = vand.u32 %v1588, 4294901760
      %2164 = vmatmul.mubr.f32.gmra.mrb[0].mxu0 %v2163
      %v2165 = vpop.f32.mrb[0].mxu0
      %v2166 = vadd.f32 %v2075, %v2165
      %v2167 = vpop.f32.mrb[0].mxu0
      %2168 = vmatprep.mubr.f32.mxu0 0.0
      %v2169 = vand.u32 %v1591, 4294901760
      %2170 = vmatmul.mubr.f32.gmra.mrb[0].mxu0 %v2169
      %v2171 = vpop.f32.mrb[0].mxu0
      %v2172 = vadd.f32 %v2081, %v2171
      %v2173 = vpop.f32.mrb[0].mxu0
      %2174 = vmatprep.mubr.f32.mxu0 0.0
      %v2175 = vand.u32 %v1594, 4294901760
      %2176 = vmatmul.mubr.f32.gmra.mrb[0].mxu0 %v2175
      %v2177 = vpop.f32.mrb[0].mxu0
      %v2178 = vadd.f32 %v2087, %v2177
      %v2179 = vpop.f32.mrb[0].mxu0
      %2180 = vmatprep.mubr.f32.mxu0 0.0
      %v2181 = vand.u32 %v1597, 4294901760
      %2182 = vmatmul.mubr.f32.gmra.mrb[0].mxu0 %v2181
      %v2183 = vpop.f32.mrb[0].mxu0
      %v2184 = vadd.f32 %v2093, %v2183
      %v2185 = vpop.f32.mrb[0].mxu0
      %2186 = vdwg.mxu0
      %v2187 = vadd.f32 %v1583, %v2166
      %v2188 = vadd.f32 %v1584, %v2172
      %v2189 = vadd.f32 %v1585, %v2178
      %v2190 = vadd.f32 %v1586, %v2184
      %2191 = vst.msk [vmem:[#allocation4] sm:$0xff] %vm1511, %v2187
      %2192 = vst.msk [vmem:[#allocation4 + $0x8] sm:$0xff] %vm1511, %v2188
      %2193 = vst.msk [vmem:[#allocation4 + $0x10] sm:$0xff] %vm1511, %v2189
      %2194 = vst.msk [vmem:[#allocation4 + $0x18] sm:$0xff] %vm1511, %v2190
      %p2195 = scmp.eq.s32.totalorder %s21, 1
      // Predicated region
      $region45: #{tpu_custom_call.1} parent=39 // pred_check
        %p2196 = pneg %p2195
      $region46: #{tpu_custom_call.1} parent=39 // pred_check_branch
        %2198 = sbr.rel (%p2196) target = $region48
      $region47: #{tpu_custom_call.1} parent=39 // pred_region
        %v2199 = vld [vmem:[%s231] sm:$0xff]
        %v2200 = vld [vmem:[%s231 + $0x8] sm:$0xff]
        %v2201 = vld [vmem:[%s231 + $0x10] sm:$0xff]
        %v2202 = vld [vmem:[%s231 + $0x18] sm:$0xff]
        %v2203 = vld [vmem:[#allocation4] sm:$0xff]
        %v2204 = vld [vmem:[#allocation4 + $0x8] sm:$0xff]
        %v2205 = vld [vmem:[#allocation4 + $0x10] sm:$0xff]
        %v2206 = vld [vmem:[#allocation4 + $0x18] sm:$0xff]
        %v2207 = vld [vmem:[#allocation5] sm:$0xff]
        %v2208 = vld [vmem:[#allocation5 + $0x8] sm:$0xff]
        %v2209 = vld [vmem:[#allocation5 + $0x10] sm:$0xff]
        %v2210 = vld [vmem:[#allocation5 + $0x18] sm:$0xff]
        %v2211 = vadd.f32 %v2207, 1e-09
        %v2212 = vadd.f32 %v2208, 1e-09
        %v2213 = vadd.f32 %v2209, 1e-09
        %v2214 = vadd.f32 %v2210, 1e-09
        %v2215 = vrcp.pop %v2211
        %v2216 = vrcp.pop %v2212
        %v2217 = vrcp.pop %v2213
        %v2218 = vrcp.pop %v2214
        %v2219 = vmul.f32 %v2211, %v2215
        %v2220 = vmul.f32 %v2212, %v2216
        %v2221 = vmul.f32 %v2213, %v2217
        %v2222 = vmul.f32 %v2214, %v2218
        %v2223 = vsub.f32 2.0, %v2219
        %v2224 = vsub.f32 2.0, %v2220
        %v2225 = vsub.f32 2.0, %v2221
        %v2226 = vsub.f32 2.0, %v2222
        %v2227 = vmul.f32 %v2215, %v2223
        %v2228 = vmul.f32 %v2216, %v2224
        %v2229 = vmul.f32 %v2217, %v2225
        %v2230 = vmul.f32 %v2218, %v2226
        %2232 = vset.pattern.permute.xlu0 0
        %2233 = vperm.xlu0 %2232, %v2227
        %v2234 = vpop.permute.xlu0 %2233
        %2237 = vset.pattern.permute.xlu0 0
        %2238 = vperm.xlu0 %2237, %v2228
        %v2239 = vpop.permute.xlu0 %2238
        %2242 = vset.pattern.permute.xlu0 0
        %2243 = vperm.xlu0 %2242, %v2229
        %v2244 = vpop.permute.xlu0 %2243
        %2247 = vset.pattern.permute.xlu0 0
        %2248 = vperm.xlu0 %2247, %v2230
        %v2249 = vpop.permute.xlu0 %2248
        %v2251 = vmul.f32 %v2203, %v2234
        %v2252 = vmul.f32 %v2204, %v2239
        %v2253 = vmul.f32 %v2205, %v2244
        %v2254 = vmul.f32 %v2206, %v2249
        %v2255 = vsub.f32 %v2199, %v2251
        %v2256 = vsub.f32 %v2200, %v2252
        %v2257 = vsub.f32 %v2201, %v2253
        %v2258 = vsub.f32 %v2202, %v2254
        %v2259 = vld [vmem:[%s3] sm:$0xff]
        %v2260 = vld [vmem:[%s3 + $0x8] sm:$0xff]
        %v2261 = vld [vmem:[%s4] sm:$0x1]
        %v2263 = vlaneseq
        %v2264 = vshrl.u32 %v2263, 7
        %v2265 = vsub.s32 0, %v2264
        %v2266 = vrot.slane %v2261, %v2265
        %v2269 = vsel %vm1511, %v2255, 0
        %v2272 = vsel %vm1511, %v2256, 0
        %v2275 = vsel %vm1511, %v2257, 0
        %v2278 = vsel %vm1511, %v2258, 0
        %2280 = vmatprep.subr.mxu0 0.0
        %v2281 = vand.u32 %v2259, 4294901760
        %2282 = vmatpush1.msra.mxu0 %v2281
        %2283 = vmatprep.subr.mxu0 0.0
        %v2284 = vand.u32 %v2260, 4294901760
        %2285 = vmatpush1.msra.mxu0 %v2284
        %2286 = vmatprep.subr.mxu0 0.0
        %2287 = vmatpush1.msra.mxu0 0.0
        %2288 = vmatprep.subr.mxu0 0.0
        %2289 = vmatpush1.msra.mxu0 0.0
        %2290 = vmatprep.subr.mxu0 0.0
        %2291 = vmatpush1.msra.mxu0 0.0
        %2292 = vmatprep.subr.mxu0 0.0
        %2293 = vmatpush1.msra.mxu0 0.0
        %2294 = vmatprep.subr.mxu0 0.0
        %2295 = vmatpush1.msra.mxu0 0.0
        %2296 = vmatprep.subr.mxu0 0.0
        %2297 = vmatpush1.msra.mxu0 0.0
        %2298 = vmatprep.subr.mxu0 0.0
        %2299 = vmatpush1.msra.mxu0 0.0
        %2300 = vmatprep.subr.mxu0 0.0
        %2301 = vmatpush1.msra.mxu0 0.0
        %2302 = vmatprep.subr.mxu0 0.0
        %2303 = vmatpush1.msra.mxu0 0.0
        %2304 = vmatprep.subr.mxu0 0.0
        %2305 = vmatpush1.msra.mxu0 0.0
        %2306 = vmatprep.subr.mxu0 0.0
        %2307 = vmatpush1.msra.mxu0 0.0
        %2308 = vmatprep.subr.mxu0 0.0
        %2309 = vmatpush1.msra.mxu0 0.0
        %2310 = vmatprep.subr.mxu0 0.0
        %2311 = vmatpush1.msra.mxu0 0.0
        %2312 = vmatprep.subr.mxu0 0.0
        %2313 = vmatpush1.msra.mxu0 0.0
        %2314 = vmatprep.subr.mxu0 0.0
        %2315 = vmatpush1.msra.mxu0 0.0
        %2316 = vmatprep.subr.mxu0 0.0
        %2317 = vmatpush1.msra.mxu0 0.0
        %2318 = vmatprep.subr.mxu0 0.0
        %2319 = vmatpush1.msra.mxu0 0.0
        %2320 = vmatprep.subr.mxu0 0.0
        %2321 = vmatpush1.msra.mxu0 0.0
        %2322 = vmatprep.subr.mxu0 0.0
        %2323 = vmatpush1.msra.mxu0 0.0
        %2324 = vmatprep.subr.mxu0 0.0
        %2325 = vmatpush1.msra.mxu0 0.0
        %2326 = vmatprep.subr.mxu0 0.0
        %2327 = vmatpush1.msra.mxu0 0.0
        %2328 = vmatprep.subr.mxu0 0.0
        %2329 = vmatpush1.msra.mxu0 0.0
        %2330 = vmatprep.subr.mxu0 0.0
        %2331 = vmatpush1.msra.mxu0 0.0
        %2332 = vmatprep.subr.mxu0 0.0
        %2333 = vmatpush1.msra.mxu0 0.0
        %2334 = vmatprep.subr.mxu0 0.0
        %2335 = vmatpush1.msra.mxu0 0.0
        %2336 = vmatprep.subr.mxu0 0.0
        %2337 = vmatpush1.msra.mxu0 0.0
        %2338 = vmatprep.subr.mxu0 0.0
        %2339 = vmatpush1.msra.mxu0 0.0
        %2340 = vmatprep.subr.mxu0 0.0
        %2341 = vmatpush1.msra.mxu0 0.0
        %2342 = vmatprep.subr.mxu0 0.0
        %2343 = vmatpush1.msra.mxu0 0.0
        %2344 = vmatprep.subr.mxu0 0.0
        %2345 = vmatpush1.msra.mxu0 0.0
        %2346 = vmatprep.mubr.f32.mxu0 0.0
        %v2347 = vand.u32 %v2269, 4294901760
        %v2348 = vsub.f32 %v2269, %v2347
        %v2349 = vand.u32 %v2348, 4294901760
        %v2350 = vsub.f32 %v2348, %v2349
        %v2351 = vand.u32 %v2350, 4294901760
        %2352 = vmatmul.mubr.f32.gmra.mrb[0].mxu0 %v2351
        %v2353 = vpop.f32.mrb[0].mxu0
        %v2354 = vadd.f32 %v2266, %v2353
        %v2355 = vpop.f32.mrb[0].mxu0
        %2356 = vmatprep.mubr.f32.mxu0 0.0
        %v2357 = vand.u32 %v2272, 4294901760
        %v2358 = vsub.f32 %v2272, %v2357
        %v2359 = vand.u32 %v2358, 4294901760
        %v2360 = vsub.f32 %v2358, %v2359
        %v2361 = vand.u32 %v2360, 4294901760
        %2362 = vmatmul.mubr.f32.gmra.mrb[0].mxu0 %v2361
        %v2363 = vpop.f32.mrb[0].mxu0
        %v2364 = vadd.f32 %v2266, %v2363
        %v2365 = vpop.f32.mrb[0].mxu0
        %2366 = vmatprep.mubr.f32.mxu0 0.0
        %v2367 = vand.u32 %v2275, 4294901760
        %v2368 = vsub.f32 %v2275, %v2367
        %v2369 = vand.u32 %v2368, 4294901760
        %v2370 = vsub.f32 %v2368, %v2369
        %v2371 = vand.u32 %v2370, 4294901760
        %2372 = vmatmul.mubr.f32.gmra.mrb[0].mxu0 %v2371
        %v2373 = vpop.f32.mrb[0].mxu0
        %v2374 = vadd.f32 %v2266, %v2373
        %v2375 = vpop.f32.mrb[0].mxu0
        %2376 = vmatprep.mubr.f32.mxu0 0.0
        %v2377 = vand.u32 %v2278, 4294901760
        %v2378 = vsub.f32 %v2278, %v2377
        %v2379 = vand.u32 %v2378, 4294901760
        %v2380 = vsub.f32 %v2378, %v2379
        %v2381 = vand.u32 %v2380, 4294901760
        %2382 = vmatmul.mubr.f32.gmra.mrb[0].mxu0 %v2381
        %v2383 = vpop.f32.mrb[0].mxu0
        %v2384 = vadd.f32 %v2266, %v2383
        %v2385 = vpop.f32.mrb[0].mxu0
        %2386 = vdwg.mxu0
        %2387 = vmatprep.subr.mxu0 0.0
        %v2388 = vand.u32 %v2259, 4294901760
        %v2389 = vsub.f32 %v2259, %v2388
        %v2390 = vand.u32 %v2389, 4294901760
        %v2391 = vsub.f32 %v2389, %v2390
        %v2392 = vand.u32 %v2391, 4294901760
        %2393 = vmatpush1.msra.mxu0 %v2392
        %2394 = vmatprep.subr.mxu0 0.0
        %v2395 = vand.u32 %v2260, 4294901760
        %v2396 = vsub.f32 %v2260, %v2395
        %v2397 = vand.u32 %v2396, 4294901760
        %v2398 = vsub.f32 %v2396, %v2397
        %v2399 = vand.u32 %v2398, 4294901760
        %2400 = vmatpush1.msra.mxu0 %v2399
        %2401 = vmatprep.subr.mxu0 0.0
        %2402 = vmatpush1.msra.mxu0 0.0
        %2403 = vmatprep.subr.mxu0 0.0
        %2404 = vmatpush1.msra.mxu0 0.0
        %2405 = vmatprep.subr.mxu0 0.0
        %2406 = vmatpush1.msra.mxu0 0.0
        %2407 = vmatprep.subr.mxu0 0.0
        %2408 = vmatpush1.msra.mxu0 0.0
        %2409 = vmatprep.subr.mxu0 0.0
        %2410 = vmatpush1.msra.mxu0 0.0
        %2411 = vmatprep.subr.mxu0 0.0
        %2412 = vmatpush1.msra.mxu0 0.0
        %2413 = vmatprep.subr.mxu0 0.0
        %2414 = vmatpush1.msra.mxu0 0.0
        %2415 = vmatprep.subr.mxu0 0.0
        %2416 = vmatpush1.msra.mxu0 0.0
        %2417 = vmatprep.subr.mxu0 0.0
        %2418 = vmatpush1.msra.mxu0 0.0
        %2419 = vmatprep.subr.mxu0 0.0
        %2420 = vmatpush1.msra.mxu0 0.0
        %2421 = vmatprep.subr.mxu0 0.0
        %2422 = vmatpush1.msra.mxu0 0.0
        %2423 = vmatprep.subr.mxu0 0.0
        %2424 = vmatpush1.msra.mxu0 0.0
        %2425 = vmatprep.subr.mxu0 0.0
        %2426 = vmatpush1.msra.mxu0 0.0
        %2427 = vmatprep.subr.mxu0 0.0
        %2428 = vmatpush1.msra.mxu0 0.0
        %2429 = vmatprep.subr.mxu0 0.0
        %2430 = vmatpush1.msra.mxu0 0.0
        %2431 = vmatprep.subr.mxu0 0.0
        %2432 = vmatpush1.msra.mxu0 0.0
        %2433 = vmatprep.subr.mxu0 0.0
        %2434 = vmatpush1.msra.mxu0 0.0
        %2435 = vmatprep.subr.mxu0 0.0
        %2436 = vmatpush1.msra.mxu0 0.0
        %2437 = vmatprep.subr.mxu0 0.0
        %2438 = vmatpush1.msra.mxu0 0.0
        %2439 = vmatprep.subr.mxu0 0.0
        %2440 = vmatpush1.msra.mxu0 0.0
        %2441 = vmatprep.subr.mxu0 0.0
        %2442 = vmatpush1.msra.mxu0 0.0
        %2443 = vmatprep.subr.mxu0 0.0
        %2444 = vmatpush1.msra.mxu0 0.0
        %2445 = vmatprep.subr.mxu0 0.0
        %2446 = vmatpush1.msra.mxu0 0.0
        %2447 = vmatprep.subr.mxu0 0.0
        %2448 = vmatpush1.msra.mxu0 0.0
        %2449 = vmatprep.subr.mxu0 0.0
        %2450 = vmatpush1.msra.mxu0 0.0
        %2451 = vmatprep.subr.mxu0 0.0
        %2452 = vmatpush1.msra.mxu0 0.0
        %2453 = vmatprep.subr.mxu0 0.0
        %2454 = vmatpush1.msra.mxu0 0.0
        %2455 = vmatprep.subr.mxu0 0.0
        %2456 = vmatpush1.msra.mxu0 0.0
        %2457 = vmatprep.subr.mxu0 0.0
        %2458 = vmatpush1.msra.mxu0 0.0
        %2459 = vmatprep.subr.mxu0 0.0
        %2460 = vmatpush1.msra.mxu0 0.0
        %2461 = vmatprep.mubr.f32.mxu0 0.0
        %v2462 = vand.u32 %v2269, 4294901760
        %2463 = vmatmul.mubr.f32.gmra.mrb[0].mxu0 %v2462
        %v2464 = vpop.f32.mrb[0].mxu0
        %v2465 = vadd.f32 %v2354, %v2464
        %v2466 = vpop.f32.mrb[0].mxu0
        %2467 = vmatprep.mubr.f32.mxu0 0.0
        %v2468 = vand.u32 %v2272, 4294901760
        %2469 = vmatmul.mubr.f32.gmra.mrb[0].mxu0 %v2468
        %v2470 = vpop.f32.mrb[0].mxu0
        %v2471 = vadd.f32 %v2364, %v2470
        %v2472 = vpop.f32.mrb[0].mxu0
        %2473 = vmatprep.mubr.f32.mxu0 0.0
        %v2474 = vand.u32 %v2275, 4294901760
        %2475 = vmatmul.mubr.f32.gmra.mrb[0].mxu0 %v2474
        %v2476 = vpop.f32.mrb[0].mxu0
        %v2477 = vadd.f32 %v2374, %v2476
        %v2478 = vpop.f32.mrb[0].mxu0
        %2479 = vmatprep.mubr.f32.mxu0 0.0
        %v2480 = vand.u32 %v2278, 4294901760
        %2481 = vmatmul.mubr.f32.gmra.mrb[0].mxu0 %v2480
        %v2482 = vpop.f32.mrb[0].mxu0
        %v2483 = vadd.f32 %v2384, %v2482
        %v2484 = vpop.f32.mrb[0].mxu0
        %2485 = vdwg.mxu0
        %2486 = vmatprep.subr.mxu0 0.0
        %v2487 = vand.u32 %v2259, 4294901760
        %v2488 = vsub.f32 %v2259, %v2487
        %2489 = vmatpush1.msra.mxu0 %v2488
        %2490 = vmatprep.subr.mxu0 0.0
        %v2491 = vand.u32 %v2260, 4294901760
        %v2492 = vsub.f32 %v2260, %v2491
        %2493 = vmatpush1.msra.mxu0 %v2492
        %2494 = vmatprep.subr.mxu0 0.0
        %2495 = vmatpush1.msra.mxu0 0.0
        %2496 = vmatprep.subr.mxu0 0.0
        %2497 = vmatpush1.msra.mxu0 0.0
        %2498 = vmatprep.subr.mxu0 0.0
        %2499 = vmatpush1.msra.mxu0 0.0
        %2500 = vmatprep.subr.mxu0 0.0
        %2501 = vmatpush1.msra.mxu0 0.0
        %2502 = vmatprep.subr.mxu0 0.0
        %2503 = vmatpush1.msra.mxu0 0.0
        %2504 = vmatprep.subr.mxu0 0.0
        %2505 = vmatpush1.msra.mxu0 0.0
        %2506 = vmatprep.subr.mxu0 0.0
        %2507 = vmatpush1.msra.mxu0 0.0
        %2508 = vmatprep.subr.mxu0 0.0
        %2509 = vmatpush1.msra.mxu0 0.0
        %2510 = vmatprep.subr.mxu0 0.0
        %2511 = vmatpush1.msra.mxu0 0.0
        %2512 = vmatprep.subr.mxu0 0.0
        %2513 = vmatpush1.msra.mxu0 0.0
        %2514 = vmatprep.subr.mxu0 0.0
        %2515 = vmatpush1.msra.mxu0 0.0
        %2516 = vmatprep.subr.mxu0 0.0
        %2517 = vmatpush1.msra.mxu0 0.0
        %2518 = vmatprep.subr.mxu0 0.0
        %2519 = vmatpush1.msra.mxu0 0.0
        %2520 = vmatprep.subr.mxu0 0.0
        %2521 = vmatpush1.msra.mxu0 0.0
        %2522 = vmatprep.subr.mxu0 0.0
        %2523 = vmatpush1.msra.mxu0 0.0
        %2524 = vmatprep.subr.mxu0 0.0
        %2525 = vmatpush1.msra.mxu0 0.0
        %2526 = vmatprep.subr.mxu0 0.0
        %2527 = vmatpush1.msra.mxu0 0.0
        %2528 = vmatprep.subr.mxu0 0.0
        %2529 = vmatpush1.msra.mxu0 0.0
        %2530 = vmatprep.subr.mxu0 0.0
        %2531 = vmatpush1.msra.mxu0 0.0
        %2532 = vmatprep.subr.mxu0 0.0
        %2533 = vmatpush1.msra.mxu0 0.0
        %2534 = vmatprep.subr.mxu0 0.0
        %2535 = vmatpush1.msra.mxu0 0.0
        %2536 = vmatprep.subr.mxu0 0.0
        %2537 = vmatpush1.msra.mxu0 0.0
        %2538 = vmatprep.subr.mxu0 0.0
        %2539 = vmatpush1.msra.mxu0 0.0
        %2540 = vmatprep.subr.mxu0 0.0
        %2541 = vmatpush1.msra.mxu0 0.0
        %2542 = vmatprep.subr.mxu0 0.0
        %2543 = vmatpush1.msra.mxu0 0.0
        %2544 = vmatprep.subr.mxu0 0.0
        %2545 = vmatpush1.msra.mxu0 0.0
        %2546 = vmatprep.subr.mxu0 0.0
        %2547 = vmatpush1.msra.mxu0 0.0
        %2548 = vmatprep.subr.mxu0 0.0
        %2549 = vmatpush1.msra.mxu0 0.0
        %2550 = vmatprep.subr.mxu0 0.0
        %2551 = vmatpush1.msra.mxu0 0.0
        %2552 = vmatprep.subr.mxu0 0.0
        %2553 = vmatpush1.msra.mxu0 0.0
        %2554 = vmatprep.mubr.f32.mxu0 0.0
        %v2555 = vand.u32 %v2269, 4294901760
        %v2556 = vsub.f32 %v2269, %v2555
        %2557 = vmatmul.mubr.f32.gmra.mrb[0].mxu0 %v2556
        %v2558 = vpop.f32.mrb[0].mxu0
        %v2559 = vadd.f32 %v2465, %v2558
        %v2560 = vpop.f32.mrb[0].mxu0
        %2561 = vmatprep.mubr.f32.mxu0 0.0
        %v2562 = vand.u32 %v2272, 4294901760
        %v2563 = vsub.f32 %v2272, %v2562
        %2564 = vmatmul.mubr.f32.gmra.mrb[0].mxu0 %v2563
        %v2565 = vpop.f32.mrb[0].mxu0
        %v2566 = vadd.f32 %v2471, %v2565
        %v2567 = vpop.f32.mrb[0].mxu0
        %2568 = vmatprep.mubr.f32.mxu0 0.0
        %v2569 = vand.u32 %v2275, 4294901760
        %v2570 = vsub.f32 %v2275, %v2569
        %2571 = vmatmul.mubr.f32.gmra.mrb[0].mxu0 %v2570
        %v2572 = vpop.f32.mrb[0].mxu0
        %v2573 = vadd.f32 %v2477, %v2572
        %v2574 = vpop.f32.mrb[0].mxu0
        %2575 = vmatprep.mubr.f32.mxu0 0.0
        %v2576 = vand.u32 %v2278, 4294901760
        %v2577 = vsub.f32 %v2278, %v2576
        %2578 = vmatmul.mubr.f32.gmra.mrb[0].mxu0 %v2577
        %v2579 = vpop.f32.mrb[0].mxu0
        %v2580 = vadd.f32 %v2483, %v2579
        %v2581 = vpop.f32.mrb[0].mxu0
        %2582 = vdwg.mxu0
        %2583 = vmatprep.subr.mxu0 0.0
        %v2584 = vand.u32 %v2259, 4294901760
        %2585 = vmatpush1.msra.mxu0 %v2584
        %2586 = vmatprep.subr.mxu0 0.0
        %v2587 = vand.u32 %v2260, 4294901760
        %2588 = vmatpush1.msra.mxu0 %v2587
        %2589 = vmatprep.subr.mxu0 0.0
        %2590 = vmatpush1.msra.mxu0 0.0
        %2591 = vmatprep.subr.mxu0 0.0
        %2592 = vmatpush1.msra.mxu0 0.0
        %2593 = vmatprep.subr.mxu0 0.0
        %2594 = vmatpush1.msra.mxu0 0.0
        %2595 = vmatprep.subr.mxu0 0.0
        %2596 = vmatpush1.msra.mxu0 0.0
        %2597 = vmatprep.subr.mxu0 0.0
        %2598 = vmatpush1.msra.mxu0 0.0
        %2599 = vmatprep.subr.mxu0 0.0
        %2600 = vmatpush1.msra.mxu0 0.0
        %2601 = vmatprep.subr.mxu0 0.0
        %2602 = vmatpush1.msra.mxu0 0.0
        %2603 = vmatprep.subr.mxu0 0.0
        %2604 = vmatpush1.msra.mxu0 0.0
        %2605 = vmatprep.subr.mxu0 0.0
        %2606 = vmatpush1.msra.mxu0 0.0
        %2607 = vmatprep.subr.mxu0 0.0
        %2608 = vmatpush1.msra.mxu0 0.0
        %2609 = vmatprep.subr.mxu0 0.0
        %2610 = vmatpush1.msra.mxu0 0.0
        %2611 = vmatprep.subr.mxu0 0.0
        %2612 = vmatpush1.msra.mxu0 0.0
        %2613 = vmatprep.subr.mxu0 0.0
        %2614 = vmatpush1.msra.mxu0 0.0
        %2615 = vmatprep.subr.mxu0 0.0
        %2616 = vmatpush1.msra.mxu0 0.0
        %2617 = vmatprep.subr.mxu0 0.0
        %2618 = vmatpush1.msra.mxu0 0.0
        %2619 = vmatprep.subr.mxu0 0.0
        %2620 = vmatpush1.msra.mxu0 0.0
        %2621 = vmatprep.subr.mxu0 0.0
        %2622 = vmatpush1.msra.mxu0 0.0
        %2623 = vmatprep.subr.mxu0 0.0
        %2624 = vmatpush1.msra.mxu0 0.0
        %2625 = vmatprep.subr.mxu0 0.0
        %2626 = vmatpush1.msra.mxu0 0.0
        %2627 = vmatprep.subr.mxu0 0.0
        %2628 = vmatpush1.msra.mxu0 0.0
        %2629 = vmatprep.subr.mxu0 0.0
        %2630 = vmatpush1.msra.mxu0 0.0
        %2631 = vmatprep.subr.mxu0 0.0
        %2632 = vmatpush1.msra.mxu0 0.0
        %2633 = vmatprep.subr.mxu0 0.0
        %2634 = vmatpush1.msra.mxu0 0.0
        %2635 = vmatprep.subr.mxu0 0.0
        %2636 = vmatpush1.msra.mxu0 0.0
        %2637 = vmatprep.subr.mxu0 0.0
        %2638 = vmatpush1.msra.mxu0 0.0
        %2639 = vmatprep.subr.mxu0 0.0
        %2640 = vmatpush1.msra.mxu0 0.0
        %2641 = vmatprep.subr.mxu0 0.0
        %2642 = vmatpush1.msra.mxu0 0.0
        %2643 = vmatprep.subr.mxu0 0.0
        %2644 = vmatpush1.msra.mxu0 0.0
        %2645 = vmatprep.subr.mxu0 0.0
        %2646 = vmatpush1.msra.mxu0 0.0
        %2647 = vmatprep.subr.mxu0 0.0
        %2648 = vmatpush1.msra.mxu0 0.0
        %2649 = vmatprep.mubr.f32.mxu0 0.0
        %v2650 = vand.u32 %v2269, 4294901760
        %v2651 = vsub.f32 %v2269, %v2650
        %v2652 = vand.u32 %v2651, 4294901760
        %2653 = vmatmul.mubr.f32.gmra.mrb[0].mxu0 %v2652
        %v2654 = vpop.f32.mrb[0].mxu0
        %v2655 = vadd.f32 %v2559, %v2654
        %v2656 = vpop.f32.mrb[0].mxu0
        %2657 = vmatprep.mubr.f32.mxu0 0.0
        %v2658 = vand.u32 %v2272, 4294901760
        %v2659 = vsub.f32 %v2272, %v2658
        %v2660 = vand.u32 %v2659, 4294901760
        %2661 = vmatmul.mubr.f32.gmra.mrb[0].mxu0 %v2660
        %v2662 = vpop.f32.mrb[0].mxu0
        %v2663 = vadd.f32 %v2566, %v2662
        %v2664 = vpop.f32.mrb[0].mxu0
        %2665 = vmatprep.mubr.f32.mxu0 0.0
        %v2666 = vand.u32 %v2275, 4294901760
        %v2667 = vsub.f32 %v2275, %v2666
        %v2668 = vand.u32 %v2667, 4294901760
        %2669 = vmatmul.mubr.f32.gmra.mrb[0].mxu0 %v2668
        %v2670 = vpop.f32.mrb[0].mxu0
        %v2671 = vadd.f32 %v2573, %v2670
        %v2672 = vpop.f32.mrb[0].mxu0
        %2673 = vmatprep.mubr.f32.mxu0 0.0
        %v2674 = vand.u32 %v2278, 4294901760
        %v2675 = vsub.f32 %v2278, %v2674
        %v2676 = vand.u32 %v2675, 4294901760
        %2677 = vmatmul.mubr.f32.gmra.mrb[0].mxu0 %v2676
        %v2678 = vpop.f32.mrb[0].mxu0
        %v2679 = vadd.f32 %v2580, %v2678
        %v2680 = vpop.f32.mrb[0].mxu0
        %2681 = vdwg.mxu0
        %2682 = vmatprep.subr.mxu0 0.0
        %v2683 = vand.u32 %v2259, 4294901760
        %v2684 = vsub.f32 %v2259, %v2683
        %v2685 = vand.u32 %v2684, 4294901760
        %2686 = vmatpush1.msra.mxu0 %v2685
        %2687 = vmatprep.subr.mxu0 0.0
        %v2688 = vand.u32 %v2260, 4294901760
        %v2689 = vsub.f32 %v2260, %v2688
        %v2690 = vand.u32 %v2689, 4294901760
        %2691 = vmatpush1.msra.mxu0 %v2690
        %2692 = vmatprep.subr.mxu0 0.0
        %2693 = vmatpush1.msra.mxu0 0.0
        %2694 = vmatprep.subr.mxu0 0.0
        %2695 = vmatpush1.msra.mxu0 0.0
        %2696 = vmatprep.subr.mxu0 0.0
        %2697 = vmatpush1.msra.mxu0 0.0
        %2698 = vmatprep.subr.mxu0 0.0
        %2699 = vmatpush1.msra.mxu0 0.0
        %2700 = vmatprep.subr.mxu0 0.0
        %2701 = vmatpush1.msra.mxu0 0.0
        %2702 = vmatprep.subr.mxu0 0.0
        %2703 = vmatpush1.msra.mxu0 0.0
        %2704 = vmatprep.subr.mxu0 0.0
        %2705 = vmatpush1.msra.mxu0 0.0
        %2706 = vmatprep.subr.mxu0 0.0
        %2707 = vmatpush1.msra.mxu0 0.0
        %2708 = vmatprep.subr.mxu0 0.0
        %2709 = vmatpush1.msra.mxu0 0.0
        %2710 = vmatprep.subr.mxu0 0.0
        %2711 = vmatpush1.msra.mxu0 0.0
        %2712 = vmatprep.subr.mxu0 0.0
        %2713 = vmatpush1.msra.mxu0 0.0
        %2714 = vmatprep.subr.mxu0 0.0
        %2715 = vmatpush1.msra.mxu0 0.0
        %2716 = vmatprep.subr.mxu0 0.0
        %2717 = vmatpush1.msra.mxu0 0.0
        %2718 = vmatprep.subr.mxu0 0.0
        %2719 = vmatpush1.msra.mxu0 0.0
        %2720 = vmatprep.subr.mxu0 0.0
        %2721 = vmatpush1.msra.mxu0 0.0
        %2722 = vmatprep.subr.mxu0 0.0
        %2723 = vmatpush1.msra.mxu0 0.0
        %2724 = vmatprep.subr.mxu0 0.0
        %2725 = vmatpush1.msra.mxu0 0.0
        %2726 = vmatprep.subr.mxu0 0.0
        %2727 = vmatpush1.msra.mxu0 0.0
        %2728 = vmatprep.subr.mxu0 0.0
        %2729 = vmatpush1.msra.mxu0 0.0
        %2730 = vmatprep.subr.mxu0 0.0
        %2731 = vmatpush1.msra.mxu0 0.0
        %2732 = vmatprep.subr.mxu0 0.0
        %2733 = vmatpush1.msra.mxu0 0.0
        %2734 = vmatprep.subr.mxu0 0.0
        %2735 = vmatpush1.msra.mxu0 0.0
        %2736 = vmatprep.subr.mxu0 0.0
        %2737 = vmatpush1.msra.mxu0 0.0
        %2738 = vmatprep.subr.mxu0 0.0
        %2739 = vmatpush1.msra.mxu0 0.0
        %2740 = vmatprep.subr.mxu0 0.0
        %2741 = vmatpush1.msra.mxu0 0.0
        %2742 = vmatprep.subr.mxu0 0.0
        %2743 = vmatpush1.msra.mxu0 0.0
        %2744 = vmatprep.subr.mxu0 0.0
        %2745 = vmatpush1.msra.mxu0 0.0
        %2746 = vmatprep.subr.mxu0 0.0
        %2747 = vmatpush1.msra.mxu0 0.0
        %2748 = vmatprep.subr.mxu0 0.0
        %2749 = vmatpush1.msra.mxu0 0.0
        %2750 = vmatprep.subr.mxu0 0.0
        %2751 = vmatpush1.msra.mxu0 0.0
        %2752 = vmatprep.mubr.f32.mxu0 0.0
        %v2753 = vand.u32 %v2269, 4294901760
        %2754 = vmatmul.mubr.f32.gmra.mrb[0].mxu0 %v2753
        %v2755 = vpop.f32.mrb[0].mxu0
        %v2756 = vadd.f32 %v2655, %v2755
        %v2757 = vpop.f32.mrb[0].mxu0
        %2758 = vmatprep.mubr.f32.mxu0 0.0
        %v2759 = vand.u32 %v2272, 4294901760
        %2760 = vmatmul.mubr.f32.gmra.mrb[0].mxu0 %v2759
        %v2761 = vpop.f32.mrb[0].mxu0
        %v2762 = vadd.f32 %v2663, %v2761
        %v2763 = vpop.f32.mrb[0].mxu0
        %2764 = vmatprep.mubr.f32.mxu0 0.0
        %v2765 = vand.u32 %v2275, 4294901760
        %2766 = vmatmul.mubr.f32.gmra.mrb[0].mxu0 %v2765
        %v2767 = vpop.f32.mrb[0].mxu0
        %v2768 = vadd.f32 %v2671, %v2767
        %v2769 = vpop.f32.mrb[0].mxu0
        %2770 = vmatprep.mubr.f32.mxu0 0.0
        %v2771 = vand.u32 %v2278, 4294901760
        %2772 = vmatmul.mubr.f32.gmra.mrb[0].mxu0 %v2771
        %v2773 = vpop.f32.mrb[0].mxu0
        %v2774 = vadd.f32 %v2679, %v2773
        %v2775 = vpop.f32.mrb[0].mxu0
        %2776 = vdwg.mxu0
        %2777 = vmatprep.subr.mxu0 0.0
        %v2778 = vand.u32 %v2259, 4294901760
        %2779 = vmatpush1.msra.mxu0 %v2778
        %2780 = vmatprep.subr.mxu0 0.0
        %v2781 = vand.u32 %v2260, 4294901760
        %2782 = vmatpush1.msra.mxu0 %v2781
        %2783 = vmatprep.subr.mxu0 0.0
        %2784 = vmatpush1.msra.mxu0 0.0
        %2785 = vmatprep.subr.mxu0 0.0
        %2786 = vmatpush1.msra.mxu0 0.0
        %2787 = vmatprep.subr.mxu0 0.0
        %2788 = vmatpush1.msra.mxu0 0.0
        %2789 = vmatprep.subr.mxu0 0.0
        %2790 = vmatpush1.msra.mxu0 0.0
        %2791 = vmatprep.subr.mxu0 0.0
        %2792 = vmatpush1.msra.mxu0 0.0
        %2793 = vmatprep.subr.mxu0 0.0
        %2794 = vmatpush1.msra.mxu0 0.0
        %2795 = vmatprep.subr.mxu0 0.0
        %2796 = vmatpush1.msra.mxu0 0.0
        %2797 = vmatprep.subr.mxu0 0.0
        %2798 = vmatpush1.msra.mxu0 0.0
        %2799 = vmatprep.subr.mxu0 0.0
        %2800 = vmatpush1.msra.mxu0 0.0
        %2801 = vmatprep.subr.mxu0 0.0
        %2802 = vmatpush1.msra.mxu0 0.0
        %2803 = vmatprep.subr.mxu0 0.0
        %2804 = vmatpush1.msra.mxu0 0.0
        %2805 = vmatprep.subr.mxu0 0.0
        %2806 = vmatpush1.msra.mxu0 0.0
        %2807 = vmatprep.subr.mxu0 0.0
        %2808 = vmatpush1.msra.mxu0 0.0
        %2809 = vmatprep.subr.mxu0 0.0
        %2810 = vmatpush1.msra.mxu0 0.0
        %2811 = vmatprep.subr.mxu0 0.0
        %2812 = vmatpush1.msra.mxu0 0.0
        %2813 = vmatprep.subr.mxu0 0.0
        %2814 = vmatpush1.msra.mxu0 0.0
        %2815 = vmatprep.subr.mxu0 0.0
        %2816 = vmatpush1.msra.mxu0 0.0
        %2817 = vmatprep.subr.mxu0 0.0
        %2818 = vmatpush1.msra.mxu0 0.0
        %2819 = vmatprep.subr.mxu0 0.0
        %2820 = vmatpush1.msra.mxu0 0.0
        %2821 = vmatprep.subr.mxu0 0.0
        %2822 = vmatpush1.msra.mxu0 0.0
        %2823 = vmatprep.subr.mxu0 0.0
        %2824 = vmatpush1.msra.mxu0 0.0
        %2825 = vmatprep.subr.mxu0 0.0
        %2826 = vmatpush1.msra.mxu0 0.0
        %2827 = vmatprep.subr.mxu0 0.0
        %2828 = vmatpush1.msra.mxu0 0.0
        %2829 = vmatprep.subr.mxu0 0.0
        %2830 = vmatpush1.msra.mxu0 0.0
        %2831 = vmatprep.subr.mxu0 0.0
        %2832 = vmatpush1.msra.mxu0 0.0
        %2833 = vmatprep.subr.mxu0 0.0
        %2834 = vmatpush1.msra.mxu0 0.0
        %2835 = vmatprep.subr.mxu0 0.0
        %2836 = vmatpush1.msra.mxu0 0.0
        %2837 = vmatprep.subr.mxu0 0.0
        %2838 = vmatpush1.msra.mxu0 0.0
        %2839 = vmatprep.subr.mxu0 0.0
        %2840 = vmatpush1.msra.mxu0 0.0
        %2841 = vmatprep.subr.mxu0 0.0
        %2842 = vmatpush1.msra.mxu0 0.0
        %2843 = vmatprep.mubr.f32.mxu0 0.0
        %v2844 = vand.u32 %v2269, 4294901760
        %2845 = vmatmul.mubr.f32.gmra.mrb[0].mxu0 %v2844
        %v2846 = vpop.f32.mrb[0].mxu0
        %v2847 = vadd.f32 %v2756, %v2846
        %v2848 = vpop.f32.mrb[0].mxu0
        %2849 = vmatprep.mubr.f32.mxu0 0.0
        %v2850 = vand.u32 %v2272, 4294901760
        %2851 = vmatmul.mubr.f32.gmra.mrb[0].mxu0 %v2850
        %v2852 = vpop.f32.mrb[0].mxu0
        %v2853 = vadd.f32 %v2762, %v2852
        %v2854 = vpop.f32.mrb[0].mxu0
        %2855 = vmatprep.mubr.f32.mxu0 0.0
        %v2856 = vand.u32 %v2275, 4294901760
        %2857 = vmatmul.mubr.f32.gmra.mrb[0].mxu0 %v2856
        %v2858 = vpop.f32.mrb[0].mxu0
        %v2859 = vadd.f32 %v2768, %v2858
        %v2860 = vpop.f32.mrb[0].mxu0
        %2861 = vmatprep.mubr.f32.mxu0 0.0
        %v2862 = vand.u32 %v2278, 4294901760
        %2863 = vmatmul.mubr.f32.gmra.mrb[0].mxu0 %v2862
        %v2864 = vpop.f32.mrb[0].mxu0
        %v2865 = vadd.f32 %v2774, %v2864
        %v2866 = vpop.f32.mrb[0].mxu0
        %2867 = vdwg.mxu0
        %v2868 = vmax.f32 %v2847, 0.0
        %v2869 = vmax.f32 %v2853, 0.0
        %v2870 = vmax.f32 %v2859, 0.0
        %v2871 = vmax.f32 %v2865, 0.0
        %v2872 = vadd.f32 %v2199, %v2868
        %v2873 = vadd.f32 %v2200, %v2869
        %v2874 = vadd.f32 %v2201, %v2870
        %v2875 = vadd.f32 %v2202, %v2871
        %2876 = vst.msk [vmem:[%s236] sm:$0xff] %vm1511, %v2872
        %2877 = vst.msk [vmem:[%s236 + $0x8] sm:$0xff] %vm1511, %v2873
        %2878 = vst.msk [vmem:[%s236 + $0x10] sm:$0xff] %vm1511, %v2874
        %2879 = vst.msk [vmem:[%s236 + $0x18] sm:$0xff] %vm1511, %v2875
      $region48: #{tpu_custom_call.1} parent=39 // pred_fallthru
        _
      %p2880 = scmp.lt.s32.totalorder %s20, 1
      %s2881 = scalar_select %p2880, %s20, 1
      %s2882 = smul.addr %s2881, 4
      %s2883 = smul.addr %s2882, 8
      %s2884 = scalar_lea.vmem %s5, %s2883
      // Predicated region
      $region49: #{tpu_custom_call.1} parent=39 // pred_check
        %p2885 = pneg %p156
      $region50: #{tpu_custom_call.1} parent=39 // pred_check_branch
        %2887 = sbr.rel (%p2885) target = $region52
      $region51: #{tpu_custom_call.1} parent=39 // pred_region
        _
      $region52: #{tpu_custom_call.1} parent=39 // pred_fallthru
        _
    $region40: #{tpu_custom_call.1} parent=5 // pred_fallthru
      _
    %p2888 = scmp.le.s32.totalorder 2, %s11
    // Predicated region
    $region53: #{tpu_custom_call.1} parent=5 // pred_check
      %p2889 = pneg %p2888
    $region54: #{tpu_custom_call.1} parent=5 // pred_check_branch
      %2891 = sbr.rel (%p2889) target = $region56
    $region55: #{tpu_custom_call.1} parent=5 // pred_region
      %s2892 = ssub.s32 %s11, 2
      // Predicated region
      $region57: #{tpu_custom_call.1} parent=55 // pred_check
        %p2893 = pneg %p162
      $region58: #{tpu_custom_call.1} parent=55 // pred_check_branch
        %2895 = sbr.rel (%p2893) target = $region60
      $region59: #{tpu_custom_call.1} parent=55 // pred_region
        %p2896 = scmp.lt.s32.totalorder %s22, 1
        %s2897 = scalar_select %p2896, %s22, 1
        %s2898 = smul.addr %s2897, 4
        %s2899 = smul.addr %s2898, 8
        %s2900 = scalar_lea.vmem %s5, %s2899
      $region60: #{tpu_custom_call.1} parent=55 // pred_fallthru
        _
    $region56: #{tpu_custom_call.1} parent=5 // pred_fallthru
      _
  $region6: #{tpu_custom_call.1} parent=0 // loop_footer
    %s15 = sadd.s32 1, %s11
  $region7: #{tpu_custom_call.1} parent=0 // loop_footer_branch
    %10 = sbr.rel target = $region3
  $region8: #{tpu_custom_call.1} parent=0 // loop_exit
    _

</llo_original>
